<compile_context>
chip_gen: v7x
topology: tpu7x:2x2x1
jax: 0.10.0
libtpu: 0.0.40
codegen_flags: <defaults>
</compile_context>

<pallas_src>
import math

import jax
import jax.numpy as jnp
from jax import lax
from jax.experimental import pallas as pl
from jax.experimental.pallas import tpu as pltpu

# Constants from the PyTorch module
Nt = 4
GRAPH_EMB = 16  # graph_embedding_size

# norm_aggOTA_mean / norm_aggOTA_var are undefined module-level globals in the
# reference source; fixed deterministically here and folded into weights/bias.
NORM_AGG_MEAN = 0.0
NORM_AGG_VAR = 1.0


def pg4u_fused_kernel(
    x_ref, ea_ref, easw_ref, src_ref, dst_ref,
    w1a_ref, w1b_ref, w1c_ref, w2a_ref, w2b_ref, wh1_ref, wh2_ref, pslab_ref,
    out_ref,
    hid_ref,
):
    f32 = jnp.float32
    t = pl.program_id(0)
    n = hid_ref.shape[0]
    e = ea_ref.shape[1]

    @pl.when(t == 0)
    def _init():
        hid_ref[...] = jnp.zeros_like(hid_ref)

    x_t = x_ref[0]       # [N, 4*Nt]
    hid = hid_ref[...]   # [N, 16]
    ea = ea_ref[0]       # [E, 2*Nt]
    easw = easw_ref[0]   # [E, 2*Nt]  == [-ea[:, Nt:], ea[:, :Nt]]
    src = src_ref[0]     # [E, 1] int32 (source node j per edge)
    dst = dst_ref[0]     # [1, E] int32 (target node i per edge)

    pslab = pslab_ref[...]           # [8, 32] packed biases + aggr weight
    b1a = pslab[0:1, :]
    b1b = pslab[1:2, :]
    b2a = pslab[2:3, :]              # NORM_AGG_MEAN already folded in
    bh1 = pslab[3:4, :]
    b2b = pslab[4:5, 0:GRAPH_EMB]
    b1c = pslab[5:6, 0:2 * Nt]
    bh2 = pslab[6:7, 0:2 * Nt]
    w2a_g = pslab[7:8, :]            # [1, 32], already scaled by 1/NORM_AGG_VAR

    # x_and_hidden = [x_input | hidden]  -> [N, 4*Nt + 16] = [N, 32]
    xfull = jnp.concatenate([x_t, hid], axis=-1)

    # One-hot gather / scatter matrices built in-kernel (no [E,N] HBM traffic).
    src_oh = (lax.broadcasted_iota(jnp.int32, (e, n), 1) == src).astype(f32)  # [E, N]
    dstt = (lax.broadcasted_iota(jnp.int32, (n, e), 0) == dst).astype(f32)    # [N, E]

    # ---- message(): x_j = x_and_hidden[src] via a single MXU matmul ----------
    xj = jnp.dot(src_oh, xfull, preferred_element_type=f32)                   # [E, 32]

    # mlp1 (w1a rows 8:16 are zero -> uses only [x_j[:, :2Nt] | x_j[:, 4Nt:]])
    h1 = jnp.maximum(jnp.dot(xj, w1a_ref[...], preferred_element_type=f32) + b1a, 0.0)
    h2 = jnp.maximum(jnp.dot(h1, w1b_ref[...], preferred_element_type=f32) + b1b, 0.0)
    agg = jnp.tanh(jnp.dot(h2, w1c_ref[...], preferred_element_type=f32) + b1c)  # [E, 8]

    # unit-ball clip:  agg / max(1, ||agg||)  ==  agg * min(1, rsqrt(||agg||^2))
    sumsq = jnp.sum(agg * agg, axis=-1, keepdims=True)
    agg = agg * jnp.minimum(1.0, lax.rsqrt(sumsq))

    # rx_power: two fused lane reductions (easw precomputed in the wrapper)
    s_val = jnp.sum(ea * agg, axis=-1, keepdims=True)    # r1 + r2
    d_val = jnp.sum(easw * agg, axis=-1, keepdims=True)  # r3 - r4
    msg = s_val * s_val + d_val * d_val                  # [E, 1]

    # ---- aggregate (scatter-add by target), reassociated so the MXU output is
    # 32 lanes wide:  ((dstt@msg - mean)/var) * w2a_g  ==  dstt @ (msg * w2a_g/var)
    aggr32 = jnp.dot(dstt, msg * w2a_g, preferred_element_type=f32)           # [N, 32]

    # ---- update(): mlp2 on [x_b | hidden | aggr_norm] (w2a rows 0:8 are zero)
    g1 = jnp.maximum(
        jnp.dot(xfull, w2a_ref[...], preferred_element_type=f32) + aggr32 + b2a, 0.0)
    comb = jnp.maximum(
        jnp.dot(g1, w2b_ref[...], preferred_element_type=f32) + b2b, 0.0)     # [N, 16]
    hidden_new = jnp.tanh(comb)
    hid_ref[...] = hidden_new

    # ---- h2o head + unit-ball clip -------------------------------------------
    o1 = jnp.maximum(
        jnp.dot(hidden_new, wh1_ref[...], preferred_element_type=f32) + bh1, 0.0)
    out = jnp.tanh(jnp.dot(o1, wh2_ref[...], preferred_element_type=f32) + bh2)  # [N, 8]
    sumsq2 = jnp.sum(out * out, axis=-1, keepdims=True)
    out = out * jnp.minimum(1.0, lax.rsqrt(sumsq2))
    out_ref[0] = out


def pg4u_forward(x, edge_attr, edge_index, params):
    """x: [N, frames, 4*Nt], edge_attr: [E, frames, 2*Nt], edge_index: [2, frames, E]."""
    n, frames, _ = x.shape
    e = edge_attr.shape[0]
    steps = frames - 1
    f32 = jnp.float32

    # Frame axis outermost so each grid step streams exactly one frame block.
    xf = jnp.transpose(x, (1, 0, 2))[:steps].astype(f32)            # [steps, N, 4*Nt]
    eaf = jnp.transpose(edge_attr, (1, 0, 2))[:steps].astype(f32)   # [steps, E, 2*Nt]
    easw = jnp.concatenate([-eaf[..., Nt:], eaf[..., :Nt]], axis=-1)
    ei = edge_index.astype(jnp.int32)
    srcf = ei[0, :steps, :, None]                                   # [steps, E, 1]
    dstf = ei[1, :steps, None, :]                                   # [steps, 1, E]

    fmap = lambda t: (t, 0, 0)
    cmap = lambda t: (0, 0)
    data_specs = [
        pl.BlockSpec((1, n, 4 * Nt), fmap),
        pl.BlockSpec((1, e, 2 * Nt), fmap),
        pl.BlockSpec((1, e, 2 * Nt), fmap),
        pl.BlockSpec((1, e, 1), fmap),
        pl.BlockSpec((1, 1, e), fmap),
    ]
    param_order = ("w1a", "w1b", "w1c", "w2a", "w2b", "wh1", "wh2", "pslab")
    param_args = [params[k] for k in param_order]
    param_specs = [pl.BlockSpec(p.shape, cmap) for p in param_args]

    out = pl.pallas_call(
        pg4u_fused_kernel,
        out_shape=jax.ShapeDtypeStruct((steps, n, 2 * Nt), f32),
        grid=(steps,),
        in_specs=data_specs + param_specs,
        out_specs=pl.BlockSpec((1, n, 2 * Nt), fmap),
        scratch_shapes=[pltpu.VMEM((n, GRAPH_EMB), f32)],
        compiler_params=pltpu.CompilerParams(
            dimension_semantics=("arbitrary",)),
    )(xf, eaf, easw, srcf, dstf, *param_args)
    return out  # [frames-1, N, 2*Nt]


def _linear_params(key, fan_in, fan_out):
    # Deterministic PyTorch-Linear-style init; weight stored as [in, out].
    k1, k2 = jax.random.split(key)
    bound = 1.0 / math.sqrt(fan_in)
    w = jax.random.uniform(k1, (fan_in, fan_out), jnp.float32, -bound, bound)
    b = jax.random.uniform(k2, (1, fan_out), jnp.float32, -bound, bound)
    return w, b


def init_params(key):
    keys = jax.random.split(key, 7)
    w1a, b1a = _linear_params(keys[0], 2 * Nt + GRAPH_EMB, 32)       # mlp1 Lin(24,32)
    w1b, b1b = _linear_params(keys[1], 32, 32)                       # mlp1 Lin(32,32)
    w1c, b1c = _linear_params(keys[2], 32, 2 * Nt)                   # mlp1 Lin(32,8)
    w2a, b2a = _linear_params(keys[3], 1 + 2 * Nt + GRAPH_EMB, 32)   # mlp2 Lin(25,32)
    w2b, b2b = _linear_params(keys[4], 32, GRAPH_EMB)                # mlp2 Lin(32,16)
    wh1, bh1 = _linear_params(keys[5], GRAPH_EMB, 32)                # h2o  Lin(16,32)
    wh2, bh2 = _linear_params(keys[6], 32, 2 * Nt)                   # h2o  Lin(32,8)

    z8 = jnp.zeros((2 * Nt, 32), jnp.float32)
    # In-kernel xfull layout: [x_a (0:8) | x_b (8:16) | hidden (16:32)].
    # mlp1 layer 1 consumes [x_a | hidden]          -> zero rows for x_b.
    w1a_p = jnp.concatenate([w1a[:2 * Nt], z8, w1a[2 * Nt:]], axis=0)          # [32, 32]
    # mlp2 layer 1 consumes [x_b | hidden | aggr]   -> zero rows for x_a; aggr split off.
    w2a_p = jnp.concatenate(
        [z8, w2a[:2 * Nt], w2a[2 * Nt:2 * Nt + GRAPH_EMB]], axis=0)            # [32, 32]
    w2a_g = w2a[2 * Nt + GRAPH_EMB:]                                           # [1, 32]

    # Fold the aggregation normalization into the weight / bias constants.
    w2a_g_s = w2a_g / NORM_AGG_VAR
    b2a_adj = b2a - (NORM_AGG_MEAN / NORM_AGG_VAR) * w2a_g

    def pad32(b):
        return jnp.pad(b, ((0, 0), (0, 32 - b.shape[1])))

    # Packed [8, 32] slab: 7 biases (narrow ones zero-padded) + scaled aggr weight.
    pslab = jnp.concatenate(
        [b1a, b1b, b2a_adj, bh1, pad32(b2b), pad32(b1c), pad32(bh2), w2a_g_s], axis=0)

    return dict(w1a=w1a_p, w1b=w1b, w1c=w1c, w2a=w2a_p, w2b=w2b,
                wh1=wh1, wh2=wh2, pslab=pslab)


if __name__ == "__main__":
    key = jax.random.PRNGKey(0)
    k_p, k_x, k_ea, k_ei = jax.random.split(key, 4)

    # links/batches/frames are undefined globals in the reference; small values here.
    links, batches, frames = 4, 2, 4
    N = links * batches          # 8 nodes
    E = 16                       # edges per frame

    params = init_params(k_p)
    x = jax.random.normal(k_x, (N, frames, 4 * Nt), jnp.float32)
    edge_attr = jax.random.normal(k_ea, (E, frames, 2 * Nt), jnp.float32)
    edge_index = jax.random.randint(k_ei, (2, frames, E), 0, N, jnp.int32)

    fwd = jax.jit(pg4u_forward)
    outputs = fwd(x, edge_attr, edge_index, params)
    jax.block_until_ready(outputs)
    assert outputs.shape == (frames - 1, N, 2 * Nt)
    assert bool(jnp.all(jnp.isfinite(outputs)))
    print("KERNEL_OK")
</pallas_src>

<mosaic_0001>
module attributes {stable_mosaic.version = 11 : i64} {
  func.func @pg4u_fused_kernel(%arg0: i32, %arg1: memref<1x8x16xf32, #tpu.memory_space<vmem>>, %arg2: memref<1x16x8xf32, #tpu.memory_space<vmem>>, %arg3: memref<1x16x8xf32, #tpu.memory_space<vmem>>, %arg4: memref<1x16x1xi32, #tpu.memory_space<vmem>>, %arg5: memref<1x1x16xi32, #tpu.memory_space<vmem>>, %arg6: memref<32x32xf32, #tpu.memory_space<vmem>>, %arg7: memref<32x32xf32, #tpu.memory_space<vmem>>, %arg8: memref<32x8xf32, #tpu.memory_space<vmem>>, %arg9: memref<32x32xf32, #tpu.memory_space<vmem>>, %arg10: memref<32x16xf32, #tpu.memory_space<vmem>>, %arg11: memref<16x32xf32, #tpu.memory_space<vmem>>, %arg12: memref<32x8xf32, #tpu.memory_space<vmem>>, %arg13: memref<8x32xf32, #tpu.memory_space<vmem>>, %arg14: memref<1x8x8xf32, #tpu.memory_space<vmem>>, %arg15: memref<8x16xf32, #tpu.memory_space<vmem>>) attributes {dimension_semantics = [#tpu.dimension_semantics<arbitrary>], iteration_bounds = array<i64: 3>, scalar_prefetch = 0 : i64, scratch_operands = 1 : i64, tpu.core_type = #tpu.core_type<tc>, window_params = [{transform_indices = @transform_0, window_bounds = array<i64: 1, 8, 16>}, {transform_indices = @transform_1, window_bounds = array<i64: 1, 16, 8>}, {transform_indices = @transform_2, window_bounds = array<i64: 1, 16, 8>}, {transform_indices = @transform_3, window_bounds = array<i64: 1, 16, 1>}, {transform_indices = @transform_4, window_bounds = array<i64: 1, 1, 16>}, {pipeline_mode = #tpu.pipeline_mode<synchronous>, transform_indices = @transform_5, window_bounds = array<i64: 32, 32>}, {pipeline_mode = #tpu.pipeline_mode<synchronous>, transform_indices = @transform_6, window_bounds = array<i64: 32, 32>}, {pipeline_mode = #tpu.pipeline_mode<synchronous>, transform_indices = @transform_7, window_bounds = array<i64: 32, 8>}, {pipeline_mode = #tpu.pipeline_mode<synchronous>, transform_indices = @transform_8, window_bounds = array<i64: 32, 32>}, {pipeline_mode = #tpu.pipeline_mode<synchronous>, transform_indices = @transform_9, window_bounds = array<i64: 32, 16>}, {pipeline_mode = #tpu.pipeline_mode<synchronous>, transform_indices = @transform_10, window_bounds = array<i64: 16, 32>}, {pipeline_mode = #tpu.pipeline_mode<synchronous>, transform_indices = @transform_11, window_bounds = array<i64: 32, 8>}, {pipeline_mode = #tpu.pipeline_mode<synchronous>, transform_indices = @transform_12, window_bounds = array<i64: 8, 32>}, {transform_indices = @transform_13, window_bounds = array<i64: 1, 8, 8>}]} {
    %c0_i32 = arith.constant 0 : i32
    %0 = arith.cmpi eq, %arg0, %c0_i32 : i32
    %1 = arith.extui %0 : i1 to i32
    %c0_i32_0 = arith.constant 0 : i32
    %2 = arith.cmpi ne, %1, %c0_i32_0 : i32
    scf.if %2 {
      %cst_57 = arith.constant 0.000000e+00 : f32
      %110 = vector.broadcast %cst_57 : f32 to vector<8x16xf32>
      %c0_58 = arith.constant 0 : index
      %c0_59 = arith.constant 0 : index
      %111 = vector.load %arg15[%c0_58, %c0_59] : memref<8x16xf32, #tpu.memory_space<vmem>>, vector<8x16xf32>
      tpu.vector_store %arg15[%c0_58, %c0_59], %110 {strides = array<i32>} : memref<8x16xf32, #tpu.memory_space<vmem>>, vector<8x16xf32>,
    } else {
    }
    %c0 = arith.constant 0 : index
    %c0_1 = arith.constant 0 : index
    %c0_2 = arith.constant 0 : index
    %3 = vector.load %arg1[%c0, %c0_1, %c0_2] : memref<1x8x16xf32, #tpu.memory_space<vmem>>, vector<1x8x16xf32>
    %4 = vector.shape_cast %3 : vector<1x8x16xf32> to vector<8x16xf32>
    %c0_3 = arith.constant 0 : index
    %c0_4 = arith.constant 0 : index
    %5 = vector.load %arg15[%c0_3, %c0_4] : memref<8x16xf32, #tpu.memory_space<vmem>>, vector<8x16xf32>
    %c0_5 = arith.constant 0 : index
    %c0_6 = arith.constant 0 : index
    %c0_7 = arith.constant 0 : index
    %6 = vector.load %arg2[%c0_5, %c0_6, %c0_7] : memref<1x16x8xf32, #tpu.memory_space<vmem>>, vector<1x16x8xf32>
    %7 = vector.shape_cast %6 : vector<1x16x8xf32> to vector<16x8xf32>
    %c0_8 = arith.constant 0 : index
    %c0_9 = arith.constant 0 : index
    %c0_10 = arith.constant 0 : index
    %8 = vector.load %arg3[%c0_8, %c0_9, %c0_10] : memref<1x16x8xf32, #tpu.memory_space<vmem>>, vector<1x16x8xf32>
    %9 = vector.shape_cast %8 : vector<1x16x8xf32> to vector<16x8xf32>
    %c0_11 = arith.constant 0 : index
    %c0_12 = arith.constant 0 : index
    %c0_13 = arith.constant 0 : index
    %10 = vector.load %arg4[%c0_11, %c0_12, %c0_13] : memref<1x16x1xi32, #tpu.memory_space<vmem>>, vector<1x16x1xi32>
    %11 = vector.shape_cast %10 : vector<1x16x1xi32> to vector<16x1xi32>
    %c0_14 = arith.constant 0 : index
    %c0_15 = arith.constant 0 : index
    %c0_16 = arith.constant 0 : index
    %12 = vector.load %arg5[%c0_14, %c0_15, %c0_16] : memref<1x1x16xi32, #tpu.memory_space<vmem>>, vector<1x1x16xi32>
    %13 = vector.shape_cast %12 : vector<1x1x16xi32> to vector<1x16xi32>
    %c0_17 = arith.constant 0 : index
    %c0_18 = arith.constant 0 : index
    %14 = vector.load %arg13[%c0_17, %c0_18] : memref<8x32xf32, #tpu.memory_space<vmem>>, vector<8x32xf32>
    %15 = vector.extract_strided_slice %14 {offsets = [0, 0], sizes = [1, 32], strides = [1, 1]} : vector<8x32xf32> to vector<1x32xf32>
    %16 = vector.extract_strided_slice %14 {offsets = [1, 0], sizes = [1, 32], strides = [1, 1]} : vector<8x32xf32> to vector<1x32xf32>
    %17 = vector.extract_strided_slice %14 {offsets = [2, 0], sizes = [1, 32], strides = [1, 1]} : vector<8x32xf32> to vector<1x32xf32>
    %18 = vector.extract_strided_slice %14 {offsets = [3, 0], sizes = [1, 32], strides = [1, 1]} : vector<8x32xf32> to vector<1x32xf32>
    %19 = vector.extract_strided_slice %14 {offsets = [4, 0], sizes = [1, 16], strides = [1, 1]} : vector<8x32xf32> to vector<1x16xf32>
    %20 = vector.extract_strided_slice %14 {offsets = [5, 0], sizes = [1, 8], strides = [1, 1]} : vector<8x32xf32> to vector<1x8xf32>
    %21 = vector.extract_strided_slice %14 {offsets = [6, 0], sizes = [1, 8], strides = [1, 1]} : vector<8x32xf32> to vector<1x8xf32>
    %22 = vector.extract_strided_slice %14 {offsets = [7, 0], sizes = [1, 32], strides = [1, 1]} : vector<8x32xf32> to vector<1x32xf32>
    %23 = tpu.concatenate %4, %5 in 1 : vector<8x16xf32>, vector<8x16xf32> -> vector<8x32xf32>
    %24 = tpu.iota {dimensions = array<i32: 1>} : vector<16x8xi32>
    %25 = vector.broadcast %11 : vector<16x1xi32> to vector<16x8xi32>
    %26 = arith.cmpi eq, %24, %25 : vector<16x8xi32>
    %27 = arith.extui %26 : vector<16x8xi1> to vector<16x8xi32>
    %28 = arith.sitofp %27 : vector<16x8xi32> to vector<16x8xf32>
    %29 = tpu.iota {dimensions = array<i32: 0>} : vector<8x16xi32>
    %30 = vector.broadcast %13 : vector<1x16xi32> to vector<8x16xi32>
    %31 = arith.cmpi eq, %29, %30 : vector<8x16xi32>
    %32 = arith.extui %31 : vector<8x16xi1> to vector<8x16xi32>
    %33 = arith.sitofp %32 : vector<8x16xi32> to vector<8x16xf32>
    %cst = arith.constant dense<0.000000e+00> : vector<16x32xf32>
    %34 = tpu.matmul %28, %23, %cst {dimension_numbers = #tpu.dot_dimension_numbers<[1], [0], [0], [1], [0, 0, 1, 1], [], []>} : vector<16x8xf32>, vector<8x32xf32>, vector<16x32xf32> -> vector<16x32xf32>
    %c0_19 = arith.constant 0 : index
    %c0_20 = arith.constant 0 : index
    %35 = vector.load %arg6[%c0_19, %c0_20] : memref<32x32xf32, #tpu.memory_space<vmem>>, vector<32x32xf32>
    %cst_21 = arith.constant dense<0.000000e+00> : vector<16x32xf32>
    %36 = tpu.matmul %34, %35, %cst_21 {dimension_numbers = #tpu.dot_dimension_numbers<[1], [0], [0], [1], [0, 0, 1, 1], [], []>} : vector<16x32xf32>, vector<32x32xf32>, vector<16x32xf32> -> vector<16x32xf32>
    %37 = vector.broadcast %15 : vector<1x32xf32> to vector<16x32xf32>
    %38 = arith.addf %36, %37 : vector<16x32xf32>
    %cst_22 = arith.constant 0.000000e+00 : f32
    %39 = vector.broadcast %cst_22 : f32 to vector<16x32xf32>
    %40 = arith.maximumf %38, %39 : vector<16x32xf32>
    %c0_23 = arith.constant 0 : index
    %c0_24 = arith.constant 0 : index
    %41 = vector.load %arg7[%c0_23, %c0_24] : memref<32x32xf32, #tpu.memory_space<vmem>>, vector<32x32xf32>
    %cst_25 = arith.constant dense<0.000000e+00> : vector<16x32xf32>
    %42 = tpu.matmul %40, %41, %cst_25 {dimension_numbers = #tpu.dot_dimension_numbers<[1], [0], [0], [1], [0, 0, 1, 1], [], []>} : vector<16x32xf32>, vector<32x32xf32>, vector<16x32xf32> -> vector<16x32xf32>
    %43 = vector.broadcast %16 : vector<1x32xf32> to vector<16x32xf32>
    %44 = arith.addf %42, %43 : vector<16x32xf32>
    %cst_26 = arith.constant 0.000000e+00 : f32
    %45 = vector.broadcast %cst_26 : f32 to vector<16x32xf32>
    %46 = arith.maximumf %44, %45 : vector<16x32xf32>
    %c0_27 = arith.constant 0 : index
    %c0_28 = arith.constant 0 : index
    %47 = vector.load %arg8[%c0_27, %c0_28] : memref<32x8xf32, #tpu.memory_space<vmem>>, vector<32x8xf32>
    %cst_29 = arith.constant dense<0.000000e+00> : vector<16x8xf32>
    %48 = tpu.matmul %46, %47, %cst_29 {dimension_numbers = #tpu.dot_dimension_numbers<[1], [0], [0], [1], [0, 0, 1, 1], [], []>} : vector<16x32xf32>, vector<32x8xf32>, vector<16x8xf32> -> vector<16x8xf32>
    %49 = vector.broadcast %20 : vector<1x8xf32> to vector<16x8xf32>
    %50 = arith.addf %48, %49 : vector<16x8xf32>
    %51 = math.tanh %50 : vector<16x8xf32>
    %52 = arith.mulf %51, %51 : vector<16x8xf32>
    %cst_30 = arith.constant dense<0.000000e+00> : vector<16xf32>
    %53 = vector.multi_reduction <add>, %52, %cst_30 [1] : vector<16x8xf32> to vector<16xf32>
    %54 = vector.shape_cast %53 : vector<16xf32> to vector<16x1xf32>
    %55 = math.rsqrt %54 : vector<16x1xf32>
    %cst_31 = arith.constant 1.000000e+00 : f32
    %56 = vector.broadcast %cst_31 : f32 to vector<16x1xf32>
    %57 = arith.minimumf %56, %55 : vector<16x1xf32>
    %58 = vector.broadcast %57 : vector<16x1xf32> to vector<16x8xf32>
    %59 = arith.mulf %51, %58 : vector<16x8xf32>
    %60 = arith.mulf %7, %59 : vector<16x8xf32>
    %cst_32 = arith.constant dense<0.000000e+00> : vector<16xf32>
    %61 = vector.multi_reduction <add>, %60, %cst_32 [1] : vector<16x8xf32> to vector<16xf32>
    %62 = vector.shape_cast %61 : vector<16xf32> to vector<16x1xf32>
    %63 = arith.mulf %9, %59 : vector<16x8xf32>
    %cst_33 = arith.constant dense<0.000000e+00> : vector<16xf32>
    %64 = vector.multi_reduction <add>, %63, %cst_33 [1] : vector<16x8xf32> to vector<16xf32>
    %65 = vector.shape_cast %64 : vector<16xf32> to vector<16x1xf32>
    %66 = arith.mulf %62, %62 : vector<16x1xf32>
    %67 = arith.mulf %65, %65 : vector<16x1xf32>
    %68 = arith.addf %66, %67 : vector<16x1xf32>
    %69 = vector.broadcast %68 : vector<16x1xf32> to vector<16x32xf32>
    %70 = vector.broadcast %22 : vector<1x32xf32> to vector<16x32xf32>
    %71 = arith.mulf %69, %70 : vector<16x32xf32>
    %cst_34 = arith.constant dense<0.000000e+00> : vector<8x32xf32>
    %72 = tpu.matmul %33, %71, %cst_34 {dimension_numbers = #tpu.dot_dimension_numbers<[1], [0], [0], [1], [0, 0, 1, 1], [], []>} : vector<8x16xf32>, vector<16x32xf32>, vector<8x32xf32> -> vector<8x32xf32>
    %c0_35 = arith.constant 0 : index
    %c0_36 = arith.constant 0 : index
    %73 = vector.load %arg9[%c0_35, %c0_36] : memref<32x32xf32, #tpu.memory_space<vmem>>, vector<32x32xf32>
    %cst_37 = arith.constant dense<0.000000e+00> : vector<8x32xf32>
    %74 = tpu.matmul %23, %73, %cst_37 {dimension_numbers = #tpu.dot_dimension_numbers<[1], [0], [0], [1], [0, 0, 1, 1], [], []>} : vector<8x32xf32>, vector<32x32xf32>, vector<8x32xf32> -> vector<8x32xf32>
    %75 = arith.addf %74, %72 : vector<8x32xf32>
    %76 = vector.broadcast %17 : vector<1x32xf32> to vector<8x32xf32>
    %77 = arith.addf %75, %76 : vector<8x32xf32>
    %cst_38 = arith.constant 0.000000e+00 : f32
    %78 = vector.broadcast %cst_38 : f32 to vector<8x32xf32>
    %79 = arith.maximumf %77, %78 : vector<8x32xf32>
    %c0_39 = arith.constant 0 : index
    %c0_40 = arith.constant 0 : index
    %80 = vector.load %arg10[%c0_39, %c0_40] : memref<32x16xf32, #tpu.memory_space<vmem>>, vector<32x16xf32>
    %cst_41 = arith.constant dense<0.000000e+00> : vector<8x16xf32>
    %81 = tpu.matmul %79, %80, %cst_41 {dimension_numbers = #tpu.dot_dimension_numbers<[1], [0], [0], [1], [0, 0, 1, 1], [], []>} : vector<8x32xf32>, vector<32x16xf32>, vector<8x16xf32> -> vector<8x16xf32>
    %82 = vector.broadcast %19 : vector<1x16xf32> to vector<8x16xf32>
    %83 = arith.addf %81, %82 : vector<8x16xf32>
    %cst_42 = arith.constant 0.000000e+00 : f32
    %84 = vector.broadcast %cst_42 : f32 to vector<8x16xf32>
    %85 = arith.maximumf %83, %84 : vector<8x16xf32>
    %86 = math.tanh %85 : vector<8x16xf32>
    %c0_43 = arith.constant 0 : index
    %c0_44 = arith.constant 0 : index
    %87 = vector.load %arg15[%c0_43, %c0_44] : memref<8x16xf32, #tpu.memory_space<vmem>>, vector<8x16xf32>
    tpu.vector_store %arg15[%c0_43, %c0_44], %86 {strides = array<i32>} : memref<8x16xf32, #tpu.memory_space<vmem>>, vector<8x16xf32>,
    %c0_45 = arith.constant 0 : index
    %c0_46 = arith.constant 0 : index
    %88 = vector.load %arg11[%c0_45, %c0_46] : memref<16x32xf32, #tpu.memory_space<vmem>>, vector<16x32xf32>
    %cst_47 = arith.constant dense<0.000000e+00> : vector<8x32xf32>
    %89 = tpu.matmul %86, %88, %cst_47 {dimension_numbers = #tpu.dot_dimension_numbers<[1], [0], [0], [1], [0, 0, 1, 1], [], []>} : vector<8x16xf32>, vector<16x32xf32>, vector<8x32xf32> -> vector<8x32xf32>
    %90 = vector.broadcast %18 : vector<1x32xf32> to vector<8x32xf32>
    %91 = arith.addf %89, %90 : vector<8x32xf32>
    %cst_48 = arith.constant 0.000000e+00 : f32
    %92 = vector.broadcast %cst_48 : f32 to vector<8x32xf32>
    %93 = arith.maximumf %91, %92 : vector<8x32xf32>
    %c0_49 = arith.constant 0 : index
    %c0_50 = arith.constant 0 : index
    %94 = vector.load %arg12[%c0_49, %c0_50] : memref<32x8xf32, #tpu.memory_space<vmem>>, vector<32x8xf32>
    %cst_51 = arith.constant dense<0.000000e+00> : vector<8x8xf32>
    %95 = tpu.matmul %93, %94, %cst_51 {dimension_numbers = #tpu.dot_dimension_numbers<[1], [0], [0], [1], [0, 0, 1, 1], [], []>} : vector<8x32xf32>, vector<32x8xf32>, vector<8x8xf32> -> vector<8x8xf32>
    %96 = vector.broadcast %21 : vector<1x8xf32> to vector<8x8xf32>
    %97 = arith.addf %95, %96 : vector<8x8xf32>
    %98 = math.tanh %97 : vector<8x8xf32>
    %99 = arith.mulf %98, %98 : vector<8x8xf32>
    %cst_52 = arith.constant dense<0.000000e+00> : vector<8xf32>
    %100 = vector.multi_reduction <add>, %99, %cst_52 [1] : vector<8x8xf32> to vector<8xf32>
    %101 = vector.shape_cast %100 : vector<8xf32> to vector<8x1xf32>
    %102 = math.rsqrt %101 : vector<8x1xf32>
    %cst_53 = arith.constant 1.000000e+00 : f32
    %103 = vector.broadcast %cst_53 : f32 to vector<8x1xf32>
    %104 = arith.minimumf %103, %102 : vector<8x1xf32>
    %105 = vector.broadcast %104 : vector<8x1xf32> to vector<8x8xf32>
    %106 = arith.mulf %98, %105 : vector<8x8xf32>
    %c0_54 = arith.constant 0 : index
    %c0_55 = arith.constant 0 : index
    %c0_56 = arith.constant 0 : index
    %107 = vector.load %arg14[%c0_54, %c0_55, %c0_56] : memref<1x8x8xf32, #tpu.memory_space<vmem>>, vector<1x8x8xf32>
    %108 = vector.shape_cast %107 : vector<1x8x8xf32> to vector<8x8xf32>
    %109 = vector.shape_cast %106 : vector<8x8xf32> to vector<1x8x8xf32>
    tpu.vector_store %arg14[%c0_54, %c0_55, %c0_56], %109 {strides = array<i32>} : memref<1x8x8xf32, #tpu.memory_space<vmem>>, vector<1x8x8xf32>,
    return
  }
  func.func @transform_0(%arg0: i32) -> (i32, i32, i32) {
    %c0_i32 = arith.constant 0 : i32
    %c0_i32_0 = arith.constant 0 : i32
    %c0_i32_1 = arith.constant 0 : i32
    return %arg0, %c0_i32, %c0_i32_0 : i32, i32, i32
  }
  func.func @transform_1(%arg0: i32) -> (i32, i32, i32) {
    %c0_i32 = arith.constant 0 : i32
    %c0_i32_0 = arith.constant 0 : i32
    %c0_i32_1 = arith.constant 0 : i32
    return %arg0, %c0_i32, %c0_i32_0 : i32, i32, i32
  }
  func.func @transform_2(%arg0: i32) -> (i32, i32, i32) {
    %c0_i32 = arith.constant 0 : i32
    %c0_i32_0 = arith.constant 0 : i32
    %c0_i32_1 = arith.constant 0 : i32
    return %arg0, %c0_i32, %c0_i32_0 : i32, i32, i32
  }
  func.func @transform_3(%arg0: i32) -> (i32, i32, i32) {
    %c0_i32 = arith.constant 0 : i32
    %c0_i32_0 = arith.constant 0 : i32
    %c0_i32_1 = arith.constant 0 : i32
    return %arg0, %c0_i32, %c0_i32_0 : i32, i32, i32
  }
  func.func @transform_4(%arg0: i32) -> (i32, i32, i32) {
    %c0_i32 = arith.constant 0 : i32
    %c0_i32_0 = arith.constant 0 : i32
    %c0_i32_1 = arith.constant 0 : i32
    return %arg0, %c0_i32, %c0_i32_0 : i32, i32, i32
  }
  func.func @transform_5(%arg0: i32) -> (i32, i32) {
    %c0_i32 = arith.constant 0 : i32
    %c0_i32_0 = arith.constant 0 : i32
    %c0_i32_1 = arith.constant 0 : i32
    return %c0_i32, %c0_i32_0 : i32, i32
  }
  func.func @transform_6(%arg0: i32) -> (i32, i32) {
    %c0_i32 = arith.constant 0 : i32
    %c0_i32_0 = arith.constant 0 : i32
    %c0_i32_1 = arith.constant 0 : i32
    return %c0_i32, %c0_i32_0 : i32, i32
  }
  func.func @transform_7(%arg0: i32) -> (i32, i32) {
    %c0_i32 = arith.constant 0 : i32
    %c0_i32_0 = arith.constant 0 : i32
    %c0_i32_1 = arith.constant 0 : i32
    return %c0_i32, %c0_i32_0 : i32, i32
  }
  func.func @transform_8(%arg0: i32) -> (i32, i32) {
    %c0_i32 = arith.constant 0 : i32
    %c0_i32_0 = arith.constant 0 : i32
    %c0_i32_1 = arith.constant 0 : i32
    return %c0_i32, %c0_i32_0 : i32, i32
  }
  func.func @transform_9(%arg0: i32) -> (i32, i32) {
    %c0_i32 = arith.constant 0 : i32
    %c0_i32_0 = arith.constant 0 : i32
    %c0_i32_1 = arith.constant 0 : i32
    return %c0_i32, %c0_i32_0 : i32, i32
  }
  func.func @transform_10(%arg0: i32) -> (i32, i32) {
    %c0_i32 = arith.constant 0 : i32
    %c0_i32_0 = arith.constant 0 : i32
    %c0_i32_1 = arith.constant 0 : i32
    return %c0_i32, %c0_i32_0 : i32, i32
  }
  func.func @transform_11(%arg0: i32) -> (i32, i32) {
    %c0_i32 = arith.constant 0 : i32
    %c0_i32_0 = arith.constant 0 : i32
    %c0_i32_1 = arith.constant 0 : i32
    return %c0_i32, %c0_i32_0 : i32, i32
  }
  func.func @transform_12(%arg0: i32) -> (i32, i32) {
    %c0_i32 = arith.constant 0 : i32
    %c0_i32_0 = arith.constant 0 : i32
    %c0_i32_1 = arith.constant 0 : i32
    return %c0_i32, %c0_i32_0 : i32, i32
  }
  func.func @transform_13(%arg0: i32) -> (i32, i32, i32) {
    %c0_i32 = arith.constant 0 : i32
    %c0_i32_0 = arith.constant 0 : i32
    %c0_i32_1 = arith.constant 0 : i32
    return %arg0, %c0_i32, %c0_i32_0 : i32, i32, i32
  }
}

</mosaic_0001>

<llo_original>
// kernel: squeeze.0
$region0: #{squeeze.0}
  #allocation0 [shape = 's32[1]{0}', space=sflag, size = 0x4, scoped, tag = 'scoped memory for squeeze.0']
  %s0 = inlined_call_operand.vmem [shape: s32[1,3,16], index: 0, kind: input, shape index: {}]
  %s1 = inlined_call_operand.vmem [shape: s32[3,16,1], index: 1, kind: output, shape index: {}]
  // Predicated region
  $region2: #{squeeze.0} parent=0 // pred_check
    _
  $region3: #{squeeze.0} parent=0 // pred_check_branch
    %3 = sbr.rel (0) target = $region5
  $region4: #{squeeze.0} parent=0 // pred_region
    _
  $region5: #{squeeze.0} parent=0 // pred_fallthru
    _
  %v4 = vld [vmem:[%s0] ss:$0 sm:$0xff]
  %6 = vbcast.lane.b32.xlu0 %v4, 256
  %v7 = vpop.permute.xlu0 %6
  %8 = vst [vmem:[%s1] sm:$0xff] %v7
  %s9 = scalar_lea.vmem %s0, 1
  %v10 = vld [vmem:[%s9] ss:$0 sm:$0xff]
  %12 = vbcast.lane.b32.xlu0 %v10, 256
  %v13 = vpop.permute.xlu0 %12
  %s14 = scalar_lea.vmem %s1, 16
  %15 = vst [vmem:[%s14] sm:$0xff] %v13
  %s16 = scalar_lea.vmem %s0, 2
  %v17 = vld [vmem:[%s16] ss:$0 sm:$0xff]
  %19 = vbcast.lane.b32.xlu0 %v17, 256
  %v20 = vpop.permute.xlu0 %19
  %s21 = scalar_lea.vmem %s1, 32
  %22 = vst [vmem:[%s21] sm:$0xff] %v20
  %v23 = vld [vmem:[%s0] ss:$0 sm:$0xff]
  %s25 = sor.u32 256, 8
  %26 = vbcast.lane.b32.xlu0 %v23, %s25
  %v27 = vpop.permute.xlu0 %26
  %s28 = scalar_lea.vmem %s1, 8
  %29 = vst [vmem:[%s28] sm:$0xff] %v27
  %s30 = scalar_lea.vmem %s0, 1
  %v31 = vld [vmem:[%s30] ss:$0 sm:$0xff]
  %s33 = sor.u32 256, 8
  %34 = vbcast.lane.b32.xlu0 %v31, %s33
  %v35 = vpop.permute.xlu0 %34
  %s36 = scalar_lea.vmem %s1, 24
  %37 = vst [vmem:[%s36] sm:$0xff] %v35
  %s38 = scalar_lea.vmem %s0, 2
  %v39 = vld [vmem:[%s38] ss:$0 sm:$0xff]
  %s41 = sor.u32 256, 8
  %42 = vbcast.lane.b32.xlu0 %v39, %s41
  %v43 = vpop.permute.xlu0 %42
  %s44 = scalar_lea.vmem %s1, 40
  %45 = vst [vmem:[%s44] sm:$0xff] %v43

// kernel: squeeze.3
$region0: #{squeeze.3}
  #allocation0 [shape = 's32[1]{0}', space=sflag, size = 0x4, scoped, tag = 'scoped memory for squeeze.3']
  %s0 = inlined_call_operand.vmem [shape: s32[1,3,16], index: 0, kind: input, shape index: {}]
  %s1 = inlined_call_operand.vmem [shape: s32[3,1,16], index: 1, kind: output, shape index: {}]
  // Predicated region
  $region2: #{squeeze.3} parent=0 // pred_check
    _
  $region3: #{squeeze.3} parent=0 // pred_check_branch
    %3 = sbr.rel (0) target = $region5
  $region4: #{squeeze.3} parent=0 // pred_region
    _
  $region5: #{squeeze.3} parent=0 // pred_fallthru
    _
  %v4 = vld [vmem:[%s0] ss:$0 sm:$0xff]
  %5 = vst [vmem:[%s1] sm:$0x1] %v4
  %s6 = scalar_lea.vmem %s0, 1
  %v7 = vld [vmem:[%s6] ss:$0 sm:$0xff]
  %s8 = scalar_lea.vmem %s1, 1
  %9 = vst [vmem:[%s8] sm:$0x1] %v7
  %s10 = scalar_lea.vmem %s0, 2
  %v11 = vld [vmem:[%s10] ss:$0 sm:$0xff]
  %s12 = scalar_lea.vmem %s1, 2
  %13 = vst [vmem:[%s12] sm:$0x1] %v11

// kernel: pg4u_forward.1
$region0: #{pg4u_forward.1}
  #allocation0 [shape = 'u32[]', space=smem, size = 0x4, offset = 0x4, fixed_abs, tag = 'smem constant byte address 0x4 - core index']
  #allocation1 [shape = 'u32[144,128]{1,0:T(1,128)}', space=vmem, size = 0x12000, scoped, tag = 'internal scratch']
  #allocation2 [shape = 'f32[8,16]{1,0:T(8,128)}', space=vmem, size = 0x1000, scoped, tag = 'scratch operand']
  %s0 = inlined_call_operand.vmem [shape: f32[3,8,16], index: 0, kind: input, shape index: {}]
  %s1 = inlined_call_operand.vmem [shape: f32[3,16,8], index: 1, kind: input, shape index: {}]
  %s2 = inlined_call_operand.vmem [shape: f32[3,16,8], index: 2, kind: input, shape index: {}]
  %s3 = inlined_call_operand.vmem [shape: s32[3,16,1], index: 3, kind: input, shape index: {}]
  %s4 = inlined_call_operand.vmem [shape: s32[3,1,16], index: 4, kind: input, shape index: {}]
  %s5 = inlined_call_operand.vmem [shape: f32[32,32], index: 5, kind: input, shape index: {}]
  %s6 = inlined_call_operand.vmem [shape: f32[32,32], index: 6, kind: input, shape index: {}]
  %s7 = inlined_call_operand.vmem [shape: f32[32,8], index: 7, kind: input, shape index: {}]
  %s8 = inlined_call_operand.vmem [shape: f32[32,32], index: 8, kind: input, shape index: {}]
  %s9 = inlined_call_operand.vmem [shape: f32[32,16], index: 9, kind: input, shape index: {}]
  %s10 = inlined_call_operand.vmem [shape: f32[16,32], index: 10, kind: input, shape index: {}]
  %s11 = inlined_call_operand.vmem [shape: f32[32,8], index: 11, kind: input, shape index: {}]
  %s12 = inlined_call_operand.vmem [shape: f32[8,32], index: 12, kind: input, shape index: {}]
  %s13 = inlined_call_operand.hbm [shape: f32[3,8,8], index: 13, kind: output, shape index: {}]
  %s14 = sld [smem:[#allocation0]]
  $region89: #{pg4u_forward.1} parent=0
    _
  %s16 = ssub.s32 1, %s14
  %s17 = scalar_select 0, %s16, %s14
  $region1: #{pg4u_forward.1} parent=0
    #allocation3 [shape = 'u8[8192]{0}', space=vmem, size = 0x2000, scoped, tag = 'output window, operand 0']
    #allocation4 [shape = 's32[2]{0}', space=sflag, size = 0x8, scoped, tag = 'scoped memory for pg4u_forward.1']
    %18 = vsyncpa [#allocation4], 0
    %s19 = scalar_lea.sflag [#allocation4], 1
    %20 = vsyncpa %s19, 0
    loop: start=0, step=1, limit=5
    $region2: #{pg4u_forward.1} parent=1 // loop_pre_header
      _
    $region3: #{pg4u_forward.1} parent=1 // loop_header
      %s22 = sphi 0, %s26
      %p23 = scmp.ge.s32.totalorder %s22, 5
      %s32 = sphi 0, %s34
      %s35 = sphi 0, %s32
      %s36 = sphi 0, %s35
      %s52 = sphi 0, %s36
      %s58 = sphi 0, %s60
      %s61 = sphi 0, %s58
      %s62 = sphi 0, %s61
      %s78 = sphi 0, %s62
      %s84 = sphi 0, %s86
      %s87 = sphi 0, %s84
      %s88 = sphi 0, %s87
      %s104 = sphi 0, %s88
      %s110 = sphi 0, %s112
      %s113 = sphi 0, %s110
      %s114 = sphi 0, %s113
      %s130 = sphi 0, %s114
      %s136 = sphi 0, %s138
      %s139 = sphi 0, %s136
      %s140 = sphi 0, %s139
      %s156 = sphi 0, %s140
      %s160 = sphi 0, %s160
      %s162 = sphi 0, %s160
      %s163 = sphi 0, %s162
      %s177 = sphi 0, %s163
      %s181 = sphi 0, %s181
      %s183 = sphi 0, %s181
      %s184 = sphi 0, %s183
      %s198 = sphi 0, %s184
      %s202 = sphi 0, %s202
      %s204 = sphi 0, %s202
      %s205 = sphi 0, %s204
      %s219 = sphi 0, %s205
      %s223 = sphi 0, %s223
      %s225 = sphi 0, %s223
      %s226 = sphi 0, %s225
      %s240 = sphi 0, %s226
      %s244 = sphi 0, %s244
      %s246 = sphi 0, %s244
      %s247 = sphi 0, %s246
      %s261 = sphi 0, %s247
      %s265 = sphi 0, %s265
      %s267 = sphi 0, %s265
      %s268 = sphi 0, %s267
      %s282 = sphi 0, %s268
      %s286 = sphi 0, %s286
      %s288 = sphi 0, %s286
      %s289 = sphi 0, %s288
      %s303 = sphi 0, %s289
      %s307 = sphi 0, %s307
      %s309 = sphi 0, %s307
      %s310 = sphi 0, %s309
      %s324 = sphi 0, %s310
      %s330 = sphi 0, %s332
      %s333 = sphi 0, %s330
      %s334 = sphi 0, %s333
      %s350 = sphi 0, %s334
    $region4: #{pg4u_forward.1} parent=1 // loop_header_branch
      %25 = sbr.rel (%p23) target = $region8
    $region5: #{pg4u_forward.1} parent=1 // loop_body
      %s27 = ssub.s32 %s22, 1
      %s28 = ssub.s32 %s22, 2
      %s29 = sadd.s32 %s22, 1
      %s30 = ssub.s32 %s22, %s29
      %p31 = scmp.eq.s32.totalorder %s30, 0
      %s33 = sadd.s32 %s32, 1
      %s34 = scalar_select %p31, %s32, %s33
      %p37 = pneg %p31
      %p38 = scmp.eq.s32.totalorder %s22, 2
      %p39 = por %p37, %p38
      %p40 = scmp.ne.s32.totalorder %s32, %s35
      %p41 = scmp.eq.s32.totalorder %s22, 0
      %p42 = por %p40, %p41
      %p43 = scmp.ne.s32.totalorder %s32, %s35
      %p44 = scmp.eq.s32.totalorder %s27, 2
      %p45 = por %p43, %p44
      %p46 = scmp.ne.s32.totalorder %s35, %s36
      %p47 = scmp.eq.s32.totalorder %s27, 0
      %p48 = por %p46, %p47
      %p49 = scmp.ne.s32.totalorder %s35, %s36
      %p50 = scmp.eq.s32.totalorder %s28, 2
      %p51 = por %p49, %p50
      %p53 = scmp.ne.s32.totalorder %s36, %s52
      %p54 = scmp.eq.s32.totalorder %s28, 0
      %p55 = por %p53, %p54
      %s56 = ssub.s32 %s22, %s29
      %p57 = scmp.eq.s32.totalorder %s56, 0
      %s59 = sadd.s32 %s58, 1
      %s60 = scalar_select %p57, %s58, %s59
      %p63 = pneg %p57
      %p64 = scmp.eq.s32.totalorder %s22, 2
      %p65 = por %p63, %p64
      %p66 = scmp.ne.s32.totalorder %s58, %s61
      %p67 = scmp.eq.s32.totalorder %s22, 0
      %p68 = por %p66, %p67
      %p69 = scmp.ne.s32.totalorder %s58, %s61
      %p70 = scmp.eq.s32.totalorder %s27, 2
      %p71 = por %p69, %p70
      %p72 = scmp.ne.s32.totalorder %s61, %s62
      %p73 = scmp.eq.s32.totalorder %s27, 0
      %p74 = por %p72, %p73
      %p75 = scmp.ne.s32.totalorder %s61, %s62
      %p76 = scmp.eq.s32.totalorder %s28, 2
      %p77 = por %p75, %p76
      %p79 = scmp.ne.s32.totalorder %s62, %s78
      %p80 = scmp.eq.s32.totalorder %s28, 0
      %p81 = por %p79, %p80
      %s82 = ssub.s32 %s22, %s29
      %p83 = scmp.eq.s32.totalorder %s82, 0
      %s85 = sadd.s32 %s84, 1
      %s86 = scalar_select %p83, %s84, %s85
      %p89 = pneg %p83
      %p90 = scmp.eq.s32.totalorder %s22, 2
      %p91 = por %p89, %p90
      %p92 = scmp.ne.s32.totalorder %s84, %s87
      %p93 = scmp.eq.s32.totalorder %s22, 0
      %p94 = por %p92, %p93
      %p95 = scmp.ne.s32.totalorder %s84, %s87
      %p96 = scmp.eq.s32.totalorder %s27, 2
      %p97 = por %p95, %p96
      %p98 = scmp.ne.s32.totalorder %s87, %s88
      %p99 = scmp.eq.s32.totalorder %s27, 0
      %p100 = por %p98, %p99
      %p101 = scmp.ne.s32.totalorder %s87, %s88
      %p102 = scmp.eq.s32.totalorder %s28, 2
      %p103 = por %p101, %p102
      %p105 = scmp.ne.s32.totalorder %s88, %s104
      %p106 = scmp.eq.s32.totalorder %s28, 0
      %p107 = por %p105, %p106
      %s108 = ssub.s32 %s22, %s29
      %p109 = scmp.eq.s32.totalorder %s108, 0
      %s111 = sadd.s32 %s110, 1
      %s112 = scalar_select %p109, %s110, %s111
      %p115 = pneg %p109
      %p116 = scmp.eq.s32.totalorder %s22, 2
      %p117 = por %p115, %p116
      %p118 = scmp.ne.s32.totalorder %s110, %s113
      %p119 = scmp.eq.s32.totalorder %s22, 0
      %p120 = por %p118, %p119
      %p121 = scmp.ne.s32.totalorder %s110, %s113
      %p122 = scmp.eq.s32.totalorder %s27, 2
      %p123 = por %p121, %p122
      %p124 = scmp.ne.s32.totalorder %s113, %s114
      %p125 = scmp.eq.s32.totalorder %s27, 0
      %p126 = por %p124, %p125
      %p127 = scmp.ne.s32.totalorder %s113, %s114
      %p128 = scmp.eq.s32.totalorder %s28, 2
      %p129 = por %p127, %p128
      %p131 = scmp.ne.s32.totalorder %s114, %s130
      %p132 = scmp.eq.s32.totalorder %s28, 0
      %p133 = por %p131, %p132
      %s134 = ssub.s32 %s22, %s29
      %p135 = scmp.eq.s32.totalorder %s134, 0
      %s137 = sadd.s32 %s136, 1
      %s138 = scalar_select %p135, %s136, %s137
      %p141 = pneg %p135
      %p142 = scmp.eq.s32.totalorder %s22, 2
      %p143 = por %p141, %p142
      %p144 = scmp.ne.s32.totalorder %s136, %s139
      %p145 = scmp.eq.s32.totalorder %s22, 0
      %p146 = por %p144, %p145
      %p147 = scmp.ne.s32.totalorder %s136, %s139
      %p148 = scmp.eq.s32.totalorder %s27, 2
      %p149 = por %p147, %p148
      %p150 = scmp.ne.s32.totalorder %s139, %s140
      %p151 = scmp.eq.s32.totalorder %s27, 0
      %p152 = por %p150, %p151
      %p153 = scmp.ne.s32.totalorder %s139, %s140
      %p154 = scmp.eq.s32.totalorder %s28, 2
      %p155 = por %p153, %p154
      %p157 = scmp.ne.s32.totalorder %s140, %s156
      %p158 = scmp.eq.s32.totalorder %s28, 0
      %p159 = por %p157, %p158
      %s161 = sadd.s32 %s160, 1
      %p164 = scmp.eq.s32.totalorder %s22, 2
      %p165 = scmp.ne.s32.totalorder %s160, %s162
      %p166 = scmp.eq.s32.totalorder %s22, 0
      %p167 = por %p165, %p166
      %p168 = scmp.ne.s32.totalorder %s160, %s162
      %p169 = scmp.eq.s32.totalorder %s27, 2
      %p170 = por %p168, %p169
      %p171 = scmp.ne.s32.totalorder %s162, %s163
      %p172 = scmp.eq.s32.totalorder %s27, 0
      %p173 = por %p171, %p172
      %p174 = scmp.ne.s32.totalorder %s162, %s163
      %p175 = scmp.eq.s32.totalorder %s28, 2
      %p176 = por %p174, %p175
      %p178 = scmp.ne.s32.totalorder %s163, %s177
      %p179 = scmp.eq.s32.totalorder %s28, 0
      %p180 = por %p178, %p179
      %s182 = sadd.s32 %s181, 1
      %p185 = scmp.eq.s32.totalorder %s22, 2
      %p186 = scmp.ne.s32.totalorder %s181, %s183
      %p187 = scmp.eq.s32.totalorder %s22, 0
      %p188 = por %p186, %p187
      %p189 = scmp.ne.s32.totalorder %s181, %s183
      %p190 = scmp.eq.s32.totalorder %s27, 2
      %p191 = por %p189, %p190
      %p192 = scmp.ne.s32.totalorder %s183, %s184
      %p193 = scmp.eq.s32.totalorder %s27, 0
      %p194 = por %p192, %p193
      %p195 = scmp.ne.s32.totalorder %s183, %s184
      %p196 = scmp.eq.s32.totalorder %s28, 2
      %p197 = por %p195, %p196
      %p199 = scmp.ne.s32.totalorder %s184, %s198
      %p200 = scmp.eq.s32.totalorder %s28, 0
      %p201 = por %p199, %p200
      %s203 = sadd.s32 %s202, 1
      %p206 = scmp.eq.s32.totalorder %s22, 2
      %p207 = scmp.ne.s32.totalorder %s202, %s204
      %p208 = scmp.eq.s32.totalorder %s22, 0
      %p209 = por %p207, %p208
      %p210 = scmp.ne.s32.totalorder %s202, %s204
      %p211 = scmp.eq.s32.totalorder %s27, 2
      %p212 = por %p210, %p211
      %p213 = scmp.ne.s32.totalorder %s204, %s205
      %p214 = scmp.eq.s32.totalorder %s27, 0
      %p215 = por %p213, %p214
      %p216 = scmp.ne.s32.totalorder %s204, %s205
      %p217 = scmp.eq.s32.totalorder %s28, 2
      %p218 = por %p216, %p217
      %p220 = scmp.ne.s32.totalorder %s205, %s219
      %p221 = scmp.eq.s32.totalorder %s28, 0
      %p222 = por %p220, %p221
      %s224 = sadd.s32 %s223, 1
      %p227 = scmp.eq.s32.totalorder %s22, 2
      %p228 = scmp.ne.s32.totalorder %s223, %s225
      %p229 = scmp.eq.s32.totalorder %s22, 0
      %p230 = por %p228, %p229
      %p231 = scmp.ne.s32.totalorder %s223, %s225
      %p232 = scmp.eq.s32.totalorder %s27, 2
      %p233 = por %p231, %p232
      %p234 = scmp.ne.s32.totalorder %s225, %s226
      %p235 = scmp.eq.s32.totalorder %s27, 0
      %p236 = por %p234, %p235
      %p237 = scmp.ne.s32.totalorder %s225, %s226
      %p238 = scmp.eq.s32.totalorder %s28, 2
      %p239 = por %p237, %p238
      %p241 = scmp.ne.s32.totalorder %s226, %s240
      %p242 = scmp.eq.s32.totalorder %s28, 0
      %p243 = por %p241, %p242
      %s245 = sadd.s32 %s244, 1
      %p248 = scmp.eq.s32.totalorder %s22, 2
      %p249 = scmp.ne.s32.totalorder %s244, %s246
      %p250 = scmp.eq.s32.totalorder %s22, 0
      %p251 = por %p249, %p250
      %p252 = scmp.ne.s32.totalorder %s244, %s246
      %p253 = scmp.eq.s32.totalorder %s27, 2
      %p254 = por %p252, %p253
      %p255 = scmp.ne.s32.totalorder %s246, %s247
      %p256 = scmp.eq.s32.totalorder %s27, 0
      %p257 = por %p255, %p256
      %p258 = scmp.ne.s32.totalorder %s246, %s247
      %p259 = scmp.eq.s32.totalorder %s28, 2
      %p260 = por %p258, %p259
      %p262 = scmp.ne.s32.totalorder %s247, %s261
      %p263 = scmp.eq.s32.totalorder %s28, 0
      %p264 = por %p262, %p263
      %s266 = sadd.s32 %s265, 1
      %p269 = scmp.eq.s32.totalorder %s22, 2
      %p270 = scmp.ne.s32.totalorder %s265, %s267
      %p271 = scmp.eq.s32.totalorder %s22, 0
      %p272 = por %p270, %p271
      %p273 = scmp.ne.s32.totalorder %s265, %s267
      %p274 = scmp.eq.s32.totalorder %s27, 2
      %p275 = por %p273, %p274
      %p276 = scmp.ne.s32.totalorder %s267, %s268
      %p277 = scmp.eq.s32.totalorder %s27, 0
      %p278 = por %p276, %p277
      %p279 = scmp.ne.s32.totalorder %s267, %s268
      %p280 = scmp.eq.s32.totalorder %s28, 2
      %p281 = por %p279, %p280
      %p283 = scmp.ne.s32.totalorder %s268, %s282
      %p284 = scmp.eq.s32.totalorder %s28, 0
      %p285 = por %p283, %p284
      %s287 = sadd.s32 %s286, 1
      %p290 = scmp.eq.s32.totalorder %s22, 2
      %p291 = scmp.ne.s32.totalorder %s286, %s288
      %p292 = scmp.eq.s32.totalorder %s22, 0
      %p293 = por %p291, %p292
      %p294 = scmp.ne.s32.totalorder %s286, %s288
      %p295 = scmp.eq.s32.totalorder %s27, 2
      %p296 = por %p294, %p295
      %p297 = scmp.ne.s32.totalorder %s288, %s289
      %p298 = scmp.eq.s32.totalorder %s27, 0
      %p299 = por %p297, %p298
      %p300 = scmp.ne.s32.totalorder %s288, %s289
      %p301 = scmp.eq.s32.totalorder %s28, 2
      %p302 = por %p300, %p301
      %p304 = scmp.ne.s32.totalorder %s289, %s303
      %p305 = scmp.eq.s32.totalorder %s28, 0
      %p306 = por %p304, %p305
      %s308 = sadd.s32 %s307, 1
      %p311 = scmp.eq.s32.totalorder %s22, 2
      %p312 = scmp.ne.s32.totalorder %s307, %s309
      %p313 = scmp.eq.s32.totalorder %s22, 0
      %p314 = por %p312, %p313
      %p315 = scmp.ne.s32.totalorder %s307, %s309
      %p316 = scmp.eq.s32.totalorder %s27, 2
      %p317 = por %p315, %p316
      %p318 = scmp.ne.s32.totalorder %s309, %s310
      %p319 = scmp.eq.s32.totalorder %s27, 0
      %p320 = por %p318, %p319
      %p321 = scmp.ne.s32.totalorder %s309, %s310
      %p322 = scmp.eq.s32.totalorder %s28, 2
      %p323 = por %p321, %p322
      %p325 = scmp.ne.s32.totalorder %s310, %s324
      %p326 = scmp.eq.s32.totalorder %s28, 0
      %p327 = por %p325, %p326
      %s328 = ssub.s32 %s22, %s29
      %p329 = scmp.eq.s32.totalorder %s328, 0
      %s331 = sadd.s32 %s330, 1
      %s332 = scalar_select %p329, %s330, %s331
      %p335 = pneg %p329
      %p336 = scmp.eq.s32.totalorder %s22, 2
      %p337 = por %p335, %p336
      %p338 = scmp.ne.s32.totalorder %s330, %s333
      %p339 = scmp.eq.s32.totalorder %s22, 0
      %p340 = por %p338, %p339
      %p341 = scmp.ne.s32.totalorder %s330, %s333
      %p342 = scmp.eq.s32.totalorder %s27, 2
      %p343 = por %p341, %p342
      %p344 = scmp.ne.s32.totalorder %s333, %s334
      %p345 = scmp.eq.s32.totalorder %s27, 0
      %p346 = por %p344, %p345
      %p347 = scmp.ne.s32.totalorder %s333, %s334
      %p348 = scmp.eq.s32.totalorder %s28, 2
      %p349 = por %p347, %p348
      %p351 = scmp.ne.s32.totalorder %s334, %s350
      %p352 = scmp.eq.s32.totalorder %s28, 0
      %p353 = por %p351, %p352
      %p354 = scmp.le.s32.totalorder 1, %s22
      %p355 = scmp.lt.s32.totalorder %s22, 4
      %p356 = pnand %p354, %p355
      %p357 = pneg %p356
      // Predicated region
      $region9: #{pg4u_forward.1} parent=5 // pred_check
        _
      $region10: #{pg4u_forward.1} parent=5 // pred_check_branch
        %359 = sbr.rel (%p356) target = $region12
      $region11: #{pg4u_forward.1} parent=5 // pred_region
        %s360 = ssub.s32 %s22, 1
        // Predicated region
        $region13: #{pg4u_forward.1} parent=11 // pred_check
          %p361 = pneg %p173
        $region14: #{pg4u_forward.1} parent=11 // pred_check_branch
          %363 = sbr.rel (%p361) target = $region16
        $region15: #{pg4u_forward.1} parent=11 // pred_region
          _
        $region16: #{pg4u_forward.1} parent=11 // pred_fallthru
          _
        // Predicated region
        $region17: #{pg4u_forward.1} parent=11 // pred_check
          %p364 = pneg %p194
        $region18: #{pg4u_forward.1} parent=11 // pred_check_branch
          %366 = sbr.rel (%p364) target = $region20
        $region19: #{pg4u_forward.1} parent=11 // pred_region
          _
        $region20: #{pg4u_forward.1} parent=11 // pred_fallthru
          _
        // Predicated region
        $region21: #{pg4u_forward.1} parent=11 // pred_check
          %p367 = pneg %p215
        $region22: #{pg4u_forward.1} parent=11 // pred_check_branch
          %369 = sbr.rel (%p367) target = $region24
        $region23: #{pg4u_forward.1} parent=11 // pred_region
          _
        $region24: #{pg4u_forward.1} parent=11 // pred_fallthru
          _
        // Predicated region
        $region25: #{pg4u_forward.1} parent=11 // pred_check
          %p370 = pneg %p236
        $region26: #{pg4u_forward.1} parent=11 // pred_check_branch
          %372 = sbr.rel (%p370) target = $region28
        $region27: #{pg4u_forward.1} parent=11 // pred_region
          _
        $region28: #{pg4u_forward.1} parent=11 // pred_fallthru
          _
        // Predicated region
        $region29: #{pg4u_forward.1} parent=11 // pred_check
          %p373 = pneg %p257
        $region30: #{pg4u_forward.1} parent=11 // pred_check_branch
          %375 = sbr.rel (%p373) target = $region32
        $region31: #{pg4u_forward.1} parent=11 // pred_region
          _
        $region32: #{pg4u_forward.1} parent=11 // pred_fallthru
          _
        // Predicated region
        $region33: #{pg4u_forward.1} parent=11 // pred_check
          %p376 = pneg %p278
        $region34: #{pg4u_forward.1} parent=11 // pred_check_branch
          %378 = sbr.rel (%p376) target = $region36
        $region35: #{pg4u_forward.1} parent=11 // pred_region
          _
        $region36: #{pg4u_forward.1} parent=11 // pred_fallthru
          _
        // Predicated region
        $region37: #{pg4u_forward.1} parent=11 // pred_check
          %p379 = pneg %p299
        $region38: #{pg4u_forward.1} parent=11 // pred_check_branch
          %381 = sbr.rel (%p379) target = $region40
        $region39: #{pg4u_forward.1} parent=11 // pred_region
          _
        $region40: #{pg4u_forward.1} parent=11 // pred_fallthru
          _
        // Predicated region
        $region41: #{pg4u_forward.1} parent=11 // pred_check
          %p382 = pneg %p320
        $region42: #{pg4u_forward.1} parent=11 // pred_check_branch
          %384 = sbr.rel (%p382) target = $region44
        $region43: #{pg4u_forward.1} parent=11 // pred_region
          _
        $region44: #{pg4u_forward.1} parent=11 // pred_fallthru
          _
      $region12: #{pg4u_forward.1} parent=5 // pred_fallthru
        _
      %p385 = scmp.lt.s32.totalorder %s22, 3
      // Predicated region
      $region45: #{pg4u_forward.1} parent=5 // pred_check
        %p386 = pneg %p385
      $region46: #{pg4u_forward.1} parent=5 // pred_check_branch
        %388 = sbr.rel (%p386) target = $region48
      $region47: #{pg4u_forward.1} parent=5 // pred_region
        // Predicated region
        $region49: #{pg4u_forward.1} parent=47 // pred_check
          %p389 = pneg %p42
        $region50: #{pg4u_forward.1} parent=47 // pred_check_branch
          %391 = sbr.rel (%p389) target = $region52
        $region51: #{pg4u_forward.1} parent=47 // pred_region
          %p392 = scmp.lt.s32.totalorder %s22, 2
          %s393 = scalar_select %p392, %s22, 2
          %s394 = smul.addr %s393, 8
          %s395 = scalar_lea.vmem %s0, %s394
        $region52: #{pg4u_forward.1} parent=47 // pred_fallthru
          _
        // Predicated region
        $region53: #{pg4u_forward.1} parent=47 // pred_check
          %p396 = pneg %p68
        $region54: #{pg4u_forward.1} parent=47 // pred_check_branch
          %398 = sbr.rel (%p396) target = $region56
        $region55: #{pg4u_forward.1} parent=47 // pred_region
          %p399 = scmp.lt.s32.totalorder %s22, 2
          %s400 = scalar_select %p399, %s22, 2
          %s401 = smul.addr %s400, 2
          %s402 = smul.addr %s401, 8
          %s403 = scalar_lea.vmem %s1, %s402
        $region56: #{pg4u_forward.1} parent=47 // pred_fallthru
          _
        // Predicated region
        $region57: #{pg4u_forward.1} parent=47 // pred_check
          %p404 = pneg %p94
        $region58: #{pg4u_forward.1} parent=47 // pred_check_branch
          %406 = sbr.rel (%p404) target = $region60
        $region59: #{pg4u_forward.1} parent=47 // pred_region
          %p407 = scmp.lt.s32.totalorder %s22, 2
          %s408 = scalar_select %p407, %s22, 2
          %s409 = smul.addr %s408, 2
          %s410 = smul.addr %s409, 8
          %s411 = scalar_lea.vmem %s2, %s410
        $region60: #{pg4u_forward.1} parent=47 // pred_fallthru
          _
        // Predicated region
        $region61: #{pg4u_forward.1} parent=47 // pred_check
          %p412 = pneg %p120
        $region62: #{pg4u_forward.1} parent=47 // pred_check_branch
          %414 = sbr.rel (%p412) target = $region64
        $region63: #{pg4u_forward.1} parent=47 // pred_region
          %p415 = scmp.lt.s32.totalorder %s22, 2
          %s416 = scalar_select %p415, %s22, 2
          %s417 = smul.addr %s416, 2
          %s418 = smul.addr %s417, 8
          %s419 = scalar_lea.vmem %s3, %s418
        $region64: #{pg4u_forward.1} parent=47 // pred_fallthru
          _
        // Predicated region
        $region65: #{pg4u_forward.1} parent=47 // pred_check
          %p420 = pneg %p146
        $region66: #{pg4u_forward.1} parent=47 // pred_check_branch
          %422 = sbr.rel (%p420) target = $region68
        $region67: #{pg4u_forward.1} parent=47 // pred_region
          %p423 = scmp.lt.s32.totalorder %s22, 2
          %s424 = scalar_select %p423, %s22, 2
          %s425 = scalar_lea.vmem %s4, %s424
        $region68: #{pg4u_forward.1} parent=47 // pred_fallthru
          _
      $region48: #{pg4u_forward.1} parent=5 // pred_fallthru
        _
      %p426 = scmp.le.s32.totalorder 1, %s22
      %p427 = scmp.lt.s32.totalorder %s22, 4
      %p428 = pnand %p426, %p427
      %p429 = pneg %p428
      // Predicated region
      $region69: #{pg4u_forward.1} parent=5 // pred_check
        _
      $region70: #{pg4u_forward.1} parent=5 // pred_check_branch
        %431 = sbr.rel (%p428) target = $region72
      $region71: #{pg4u_forward.1} parent=5 // pred_region
        %s432 = ssub.s32 %s22, 1
        %p433 = scmp.lt.s32.totalorder %s27, 2
        %s434 = scalar_select %p433, %s27, 2
        %s435 = smul.addr %s434, 8
        %s436 = scalar_lea.vmem %s0, %s435
        %p437 = pneg %p48
        %p438 = pneg %p45
        %p439 = scmp.lt.s32.totalorder %s27, 2
        %s440 = scalar_select %p439, %s27, 2
        %s441 = smul.addr %s440, 2
        %s442 = smul.addr %s441, 8
        %s443 = scalar_lea.vmem %s1, %s442
        %p444 = pneg %p74
        %p445 = pneg %p71
        %p446 = scmp.lt.s32.totalorder %s27, 2
        %s447 = scalar_select %p446, %s27, 2
        %s448 = smul.addr %s447, 2
        %s449 = smul.addr %s448, 8
        %s450 = scalar_lea.vmem %s2, %s449
        %p451 = pneg %p100
        %p452 = pneg %p97
        %p453 = scmp.lt.s32.totalorder %s27, 2
        %s454 = scalar_select %p453, %s27, 2
        %s455 = smul.addr %s454, 2
        %s456 = smul.addr %s455, 8
        %s457 = scalar_lea.vmem %s3, %s456
        %p458 = pneg %p126
        %p459 = pneg %p123
        %p460 = scmp.lt.s32.totalorder %s27, 2
        %s461 = scalar_select %p460, %s27, 2
        %s462 = scalar_lea.vmem %s4, %s461
        %p463 = pneg %p152
        %p464 = pneg %p149
        %p465 = pneg %p173
        %p466 = pneg %p170
        %p467 = pneg %p194
        %p468 = pneg %p191
        %p469 = pneg %p215
        %p470 = pneg %p212
        %p471 = pneg %p236
        %p472 = pneg %p233
        %p473 = pneg %p257
        %p474 = pneg %p254
        %p475 = pneg %p278
        %p476 = pneg %p275
        %p477 = pneg %p299
        %p478 = pneg %p296
        %p479 = pneg %p320
        %p480 = pneg %p317
        %p481 = pneg %p346
        %p482 = pneg %p343
        %s483 = sand.u32 %s333, 1
        %s484 = scalar_lea.sflag [#allocation4], %s483
        %s485 = sand.u32 %s333, 1
        %s486 = smul.addr %s485, 8
        %s487 = scalar_lea.vmem [#allocation3], %s486
        %p488 = scmp.lt.s32.totalorder %s27, 2
        %s489 = scalar_select %p488, %s27, 2
        %s490 = smul.addr %s489, 8
        %s491 = scalar_lea.vmem %s0, %s490
        %p492 = scmp.lt.s32.totalorder %s27, 2
        %s493 = scalar_select %p492, %s27, 2
        %s494 = smul.addr %s493, 2
        %s495 = smul.addr %s494, 8
        %s496 = scalar_lea.vmem %s1, %s495
        %p497 = scmp.lt.s32.totalorder %s27, 2
        %s498 = scalar_select %p497, %s27, 2
        %s499 = smul.addr %s498, 2
        %s500 = smul.addr %s499, 8
        %s501 = scalar_lea.vmem %s2, %s500
        %p502 = scmp.lt.s32.totalorder %s27, 2
        %s503 = scalar_select %p502, %s27, 2
        %s504 = smul.addr %s503, 2
        %s505 = smul.addr %s504, 8
        %s506 = scalar_lea.vmem %s3, %s505
        %p507 = scmp.lt.s32.totalorder %s27, 2
        %s508 = scalar_select %p507, %s27, 2
        %s509 = scalar_lea.vmem %s4, %s508
        %p510 = scmp.eq.s32.totalorder %s27, 0
        // Predicated region
        $region73: #{pg4u_forward.1} parent=71 // pred_check
          %p511 = pneg %p510
        $region74: #{pg4u_forward.1} parent=71 // pred_check_branch
          %513 = sbr.rel (%p511) target = $region76
        $region75: #{pg4u_forward.1} parent=71 // pred_region
          %vm514 = vcmask 130048
          %515 = vst.msk [vmem:[#allocation2] sm:$0xff] %vm514, 0.0
        $region76: #{pg4u_forward.1} parent=71 // pred_fallthru
          _
        %v516 = vld [vmem:[%s491] sm:$0xff]
        %v517 = vld [vmem:[#allocation2] sm:$0xff]
        %v518 = vld [vmem:[%s496] sm:$0xff]
        %v519 = vld [vmem:[%s496 + $0x8] sm:$0xff]
        %v520 = vld [vmem:[%s501] sm:$0xff]
        %v521 = vld [vmem:[%s501 + $0x8] sm:$0xff]
        %v522 = vld [vmem:[%s506] sm:$0xff]
        %v523 = vld [vmem:[%s506 + $0x8] sm:$0xff]
        %v524 = vld [vmem:[%s509] sm:$0x1]
        %v525 = vld [vmem:[%s12] sm:$0xff]
        %527 = vrot.lane.b32.xlu0 %v517, 16
        %v528 = vpop.permute.xlu0 %527
        %vm530 = vcmask 130048
        %v531 = vsel %vm530, %v516, %v528
        %v532 = vlaneseq
        %v533 = vand.u32 %v532, 127
        %534 = vset.pattern.permute.xlu0 0
        %535 = vperm.xlu0 %534, %v522
        %v536 = vpop.permute.xlu0 %535
        %537 = vset.pattern.permute.xlu0 0
        %538 = vperm.xlu0 %537, %v523
        %v539 = vpop.permute.xlu0 %538
        %vm540 = vcmp.eq.s32.totalorder %v533, %v536
        %vm541 = vcmp.eq.s32.totalorder %v533, %v539
        %v542 = vsel %vm540, 1, 0
        %v543 = vsel %vm541, 1, 0
        %v544 = vcvt.s32.f32 %v542
        %v545 = vcvt.s32.f32 %v543
        %v546 = vlaneseq
        %v547 = vshrl.u32 %v546, 7
        %v548 = vlaneseq
        %v549 = vshrl.u32 %v548, 7
        %v550 = vsub.s32 0, %v549
        %v551 = vrot.slane %v524, %v550
        %vm552 = vcmp.eq.s32.totalorder %v547, %v551
        %v553 = vsel %vm552, 1, 0
        %v554 = vcvt.s32.f32 %v553
        %vm555 = vcmask 64512
        %v557 = vsel %vm555, %v544, 0
        %v560 = vsel %vm555, %v545, 0
        %562 = vmatprep.subr.mxu0 0.0
        %563 = vmatpush1.msra.mxu0 %v531
        %564 = vmatprep.subr.mxu0 0.0
        %565 = vmatpush1.msra.mxu0 0.0
        %566 = vmatprep.subr.mxu0 0.0
        %567 = vmatpush1.msra.mxu0 0.0
        %568 = vmatprep.subr.mxu0 0.0
        %569 = vmatpush1.msra.mxu0 0.0
        %570 = vmatprep.subr.mxu0 0.0
        %571 = vmatpush1.msra.mxu0 0.0
        %572 = vmatprep.subr.mxu0 0.0
        %573 = vmatpush1.msra.mxu0 0.0
        %574 = vmatprep.subr.mxu0 0.0
        %575 = vmatpush1.msra.mxu0 0.0
        %576 = vmatprep.subr.mxu0 0.0
        %577 = vmatpush1.msra.mxu0 0.0
        %578 = vmatprep.subr.mxu0 0.0
        %579 = vmatpush1.msra.mxu0 0.0
        %580 = vmatprep.subr.mxu0 0.0
        %581 = vmatpush1.msra.mxu0 0.0
        %582 = vmatprep.subr.mxu0 0.0
        %583 = vmatpush1.msra.mxu0 0.0
        %584 = vmatprep.subr.mxu0 0.0
        %585 = vmatpush1.msra.mxu0 0.0
        %586 = vmatprep.subr.mxu0 0.0
        %587 = vmatpush1.msra.mxu0 0.0
        %588 = vmatprep.subr.mxu0 0.0
        %589 = vmatpush1.msra.mxu0 0.0
        %590 = vmatprep.subr.mxu0 0.0
        %591 = vmatpush1.msra.mxu0 0.0
        %592 = vmatprep.subr.mxu0 0.0
        %593 = vmatpush1.msra.mxu0 0.0
        %594 = vmatprep.subr.mxu0 0.0
        %595 = vmatpush1.msra.mxu0 0.0
        %596 = vmatprep.subr.mxu0 0.0
        %597 = vmatpush1.msra.mxu0 0.0
        %598 = vmatprep.subr.mxu0 0.0
        %599 = vmatpush1.msra.mxu0 0.0
        %600 = vmatprep.subr.mxu0 0.0
        %601 = vmatpush1.msra.mxu0 0.0
        %602 = vmatprep.subr.mxu0 0.0
        %603 = vmatpush1.msra.mxu0 0.0
        %604 = vmatprep.subr.mxu0 0.0
        %605 = vmatpush1.msra.mxu0 0.0
        %606 = vmatprep.subr.mxu0 0.0
        %607 = vmatpush1.msra.mxu0 0.0
        %608 = vmatprep.subr.mxu0 0.0
        %609 = vmatpush1.msra.mxu0 0.0
        %610 = vmatprep.subr.mxu0 0.0
        %611 = vmatpush1.msra.mxu0 0.0
        %612 = vmatprep.subr.mxu0 0.0
        %613 = vmatpush1.msra.mxu0 0.0
        %614 = vmatprep.subr.mxu0 0.0
        %615 = vmatpush1.msra.mxu0 0.0
        %616 = vmatprep.subr.mxu0 0.0
        %617 = vmatpush1.msra.mxu0 0.0
        %618 = vmatprep.subr.mxu0 0.0
        %619 = vmatpush1.msra.mxu0 0.0
        %620 = vmatprep.subr.mxu0 0.0
        %621 = vmatpush1.msra.mxu0 0.0
        %622 = vmatprep.subr.mxu0 0.0
        %623 = vmatpush1.msra.mxu0 0.0
        %624 = vmatprep.subr.mxu0 0.0
        %625 = vmatpush1.msra.mxu0 0.0
        %626 = vmatprep.mubr.f32.mxu0 0.0
        %627 = vmatmul.mubr.f32.gmra.mrb[0].mxu0 %v557
        %v628 = vpop.f32.mrb[0].mxu0
        %v629 = vadd.f32 0.0, %v628
        %v630 = vpop.f32.mrb[0].mxu0
        %631 = vmatprep.mubr.f32.mxu0 0.0
        %632 = vmatmul.mubr.f32.gmra.mrb[0].mxu0 %v560
        %v633 = vpop.f32.mrb[0].mxu0
        %v634 = vadd.f32 0.0, %v633
        %v635 = vpop.f32.mrb[0].mxu0
        %636 = vdwg.mxu0
        %v637 = vld [vmem:[%s5] sm:$0xff]
        %v638 = vld [vmem:[%s5 + $0x8] sm:$0xff]
        %v639 = vld [vmem:[%s5 + $0x10] sm:$0xff]
        %v640 = vld [vmem:[%s5 + $0x18] sm:$0xff]
        %v641 = vlaneseq
        %v642 = vshrl.u32 %v641, 7
        %v643 = vsub.s32 0, %v642
        %v644 = vrot.slane %v525, %v643
        %vm645 = vcmask 261120
        %v647 = vsel %vm645, %v629, 0
        %v650 = vsel %vm645, %v634, 0
        %652 = vmatprep.subr.mxu0 0.0
        %653 = vmatpush1.msra.mxu0 %v637
        %654 = vmatprep.subr.mxu0 0.0
        %655 = vmatpush1.msra.mxu0 %v638
        %656 = vmatprep.subr.mxu0 0.0
        %657 = vmatpush1.msra.mxu0 %v639
        %658 = vmatprep.subr.mxu0 0.0
        %659 = vmatpush1.msra.mxu0 %v640
        %660 = vmatprep.subr.mxu0 0.0
        %661 = vmatpush1.msra.mxu0 0.0
        %662 = vmatprep.subr.mxu0 0.0
        %663 = vmatpush1.msra.mxu0 0.0
        %664 = vmatprep.subr.mxu0 0.0
        %665 = vmatpush1.msra.mxu0 0.0
        %666 = vmatprep.subr.mxu0 0.0
        %667 = vmatpush1.msra.mxu0 0.0
        %668 = vmatprep.subr.mxu0 0.0
        %669 = vmatpush1.msra.mxu0 0.0
        %670 = vmatprep.subr.mxu0 0.0
        %671 = vmatpush1.msra.mxu0 0.0
        %672 = vmatprep.subr.mxu0 0.0
        %673 = vmatpush1.msra.mxu0 0.0
        %674 = vmatprep.subr.mxu0 0.0
        %675 = vmatpush1.msra.mxu0 0.0
        %676 = vmatprep.subr.mxu0 0.0
        %677 = vmatpush1.msra.mxu0 0.0
        %678 = vmatprep.subr.mxu0 0.0
        %679 = vmatpush1.msra.mxu0 0.0
        %680 = vmatprep.subr.mxu0 0.0
        %681 = vmatpush1.msra.mxu0 0.0
        %682 = vmatprep.subr.mxu0 0.0
        %683 = vmatpush1.msra.mxu0 0.0
        %684 = vmatprep.subr.mxu0 0.0
        %685 = vmatpush1.msra.mxu0 0.0
        %686 = vmatprep.subr.mxu0 0.0
        %687 = vmatpush1.msra.mxu0 0.0
        %688 = vmatprep.subr.mxu0 0.0
        %689 = vmatpush1.msra.mxu0 0.0
        %690 = vmatprep.subr.mxu0 0.0
        %691 = vmatpush1.msra.mxu0 0.0
        %692 = vmatprep.subr.mxu0 0.0
        %693 = vmatpush1.msra.mxu0 0.0
        %694 = vmatprep.subr.mxu0 0.0
        %695 = vmatpush1.msra.mxu0 0.0
        %696 = vmatprep.subr.mxu0 0.0
        %697 = vmatpush1.msra.mxu0 0.0
        %698 = vmatprep.subr.mxu0 0.0
        %699 = vmatpush1.msra.mxu0 0.0
        %700 = vmatprep.subr.mxu0 0.0
        %701 = vmatpush1.msra.mxu0 0.0
        %702 = vmatprep.subr.mxu0 0.0
        %703 = vmatpush1.msra.mxu0 0.0
        %704 = vmatprep.subr.mxu0 0.0
        %705 = vmatpush1.msra.mxu0 0.0
        %706 = vmatprep.subr.mxu0 0.0
        %707 = vmatpush1.msra.mxu0 0.0
        %708 = vmatprep.subr.mxu0 0.0
        %709 = vmatpush1.msra.mxu0 0.0
        %710 = vmatprep.subr.mxu0 0.0
        %711 = vmatpush1.msra.mxu0 0.0
        %712 = vmatprep.subr.mxu0 0.0
        %713 = vmatpush1.msra.mxu0 0.0
        %714 = vmatprep.subr.mxu0 0.0
        %715 = vmatpush1.msra.mxu0 0.0
        %716 = vmatprep.mubr.f32.mxu0 0.0
        %717 = vmatmul.mubr.f32.gmra.mrb[0].mxu0 %v647
        %v718 = vpop.f32.mrb[0].mxu0
        %v719 = vadd.f32 %v644, %v718
        %v720 = vpop.f32.mrb[0].mxu0
        %721 = vmatprep.mubr.f32.mxu0 0.0
        %722 = vmatmul.mubr.f32.gmra.mrb[0].mxu0 %v650
        %v723 = vpop.f32.mrb[0].mxu0
        %v724 = vadd.f32 %v644, %v723
        %v725 = vpop.f32.mrb[0].mxu0
        %726 = vdwg.mxu0
        %v727 = vmax.f32 %v719, 0.0
        %v728 = vmax.f32 %v724, 0.0
        %v729 = vld [vmem:[%s6] sm:$0xff]
        %v730 = vld [vmem:[%s6 + $0x8] sm:$0xff]
        %v731 = vld [vmem:[%s6 + $0x10] sm:$0xff]
        %v732 = vld [vmem:[%s6 + $0x18] sm:$0xff]
        %v733 = vlaneseq
        %v734 = vshrl.u32 %v733, 7
        %v735 = vsub.s32 1, %v734
        %v736 = vrot.slane %v525, %v735
        %v738 = vsel %vm645, %v727, 0
        %v741 = vsel %vm645, %v728, 0
        %743 = vmatprep.subr.mxu0 0.0
        %744 = vmatpush1.msra.mxu0 %v729
        %745 = vmatprep.subr.mxu0 0.0
        %746 = vmatpush1.msra.mxu0 %v730
        %747 = vmatprep.subr.mxu0 0.0
        %748 = vmatpush1.msra.mxu0 %v731
        %749 = vmatprep.subr.mxu0 0.0
        %750 = vmatpush1.msra.mxu0 %v732
        %751 = vmatprep.subr.mxu0 0.0
        %752 = vmatpush1.msra.mxu0 0.0
        %753 = vmatprep.subr.mxu0 0.0
        %754 = vmatpush1.msra.mxu0 0.0
        %755 = vmatprep.subr.mxu0 0.0
        %756 = vmatpush1.msra.mxu0 0.0
        %757 = vmatprep.subr.mxu0 0.0
        %758 = vmatpush1.msra.mxu0 0.0
        %759 = vmatprep.subr.mxu0 0.0
        %760 = vmatpush1.msra.mxu0 0.0
        %761 = vmatprep.subr.mxu0 0.0
        %762 = vmatpush1.msra.mxu0 0.0
        %763 = vmatprep.subr.mxu0 0.0
        %764 = vmatpush1.msra.mxu0 0.0
        %765 = vmatprep.subr.mxu0 0.0
        %766 = vmatpush1.msra.mxu0 0.0
        %767 = vmatprep.subr.mxu0 0.0
        %768 = vmatpush1.msra.mxu0 0.0
        %769 = vmatprep.subr.mxu0 0.0
        %770 = vmatpush1.msra.mxu0 0.0
        %771 = vmatprep.subr.mxu0 0.0
        %772 = vmatpush1.msra.mxu0 0.0
        %773 = vmatprep.subr.mxu0 0.0
        %774 = vmatpush1.msra.mxu0 0.0
        %775 = vmatprep.subr.mxu0 0.0
        %776 = vmatpush1.msra.mxu0 0.0
        %777 = vmatprep.subr.mxu0 0.0
        %778 = vmatpush1.msra.mxu0 0.0
        %779 = vmatprep.subr.mxu0 0.0
        %780 = vmatpush1.msra.mxu0 0.0
        %781 = vmatprep.subr.mxu0 0.0
        %782 = vmatpush1.msra.mxu0 0.0
        %783 = vmatprep.subr.mxu0 0.0
        %784 = vmatpush1.msra.mxu0 0.0
        %785 = vmatprep.subr.mxu0 0.0
        %786 = vmatpush1.msra.mxu0 0.0
        %787 = vmatprep.subr.mxu0 0.0
        %788 = vmatpush1.msra.mxu0 0.0
        %789 = vmatprep.subr.mxu0 0.0
        %790 = vmatpush1.msra.mxu0 0.0
        %791 = vmatprep.subr.mxu0 0.0
        %792 = vmatpush1.msra.mxu0 0.0
        %793 = vmatprep.subr.mxu0 0.0
        %794 = vmatpush1.msra.mxu0 0.0
        %795 = vmatprep.subr.mxu0 0.0
        %796 = vmatpush1.msra.mxu0 0.0
        %797 = vmatprep.subr.mxu0 0.0
        %798 = vmatpush1.msra.mxu0 0.0
        %799 = vmatprep.subr.mxu0 0.0
        %800 = vmatpush1.msra.mxu0 0.0
        %801 = vmatprep.subr.mxu0 0.0
        %802 = vmatpush1.msra.mxu0 0.0
        %803 = vmatprep.subr.mxu0 0.0
        %804 = vmatpush1.msra.mxu0 0.0
        %805 = vmatprep.subr.mxu0 0.0
        %806 = vmatpush1.msra.mxu0 0.0
        %807 = vmatprep.mubr.f32.mxu0 0.0
        %808 = vmatmul.mubr.f32.gmra.mrb[0].mxu0 %v738
        %v809 = vpop.f32.mrb[0].mxu0
        %v810 = vadd.f32 %v736, %v809
        %v811 = vpop.f32.mrb[0].mxu0
        %812 = vmatprep.mubr.f32.mxu0 0.0
        %813 = vmatmul.mubr.f32.gmra.mrb[0].mxu0 %v741
        %v814 = vpop.f32.mrb[0].mxu0
        %v815 = vadd.f32 %v736, %v814
        %v816 = vpop.f32.mrb[0].mxu0
        %817 = vdwg.mxu0
        %v818 = vmax.f32 %v810, 0.0
        %v819 = vmax.f32 %v815, 0.0
        %v820 = vld [vmem:[%s7] sm:$0xff]
        %v821 = vld [vmem:[%s7 + $0x8] sm:$0xff]
        %v822 = vld [vmem:[%s7 + $0x10] sm:$0xff]
        %v823 = vld [vmem:[%s7 + $0x18] sm:$0xff]
        %v824 = vlaneseq
        %v825 = vshrl.u32 %v824, 7
        %v826 = vsub.s32 5, %v825
        %v827 = vrot.slane %v525, %v826
        %v829 = vsel %vm645, %v818, 0
        %v832 = vsel %vm645, %v819, 0
        %834 = vmatprep.subr.mxu0 0.0
        %835 = vmatpush1.msra.mxu0 %v820
        %836 = vmatprep.subr.mxu0 0.0
        %837 = vmatpush1.msra.mxu0 %v821
        %838 = vmatprep.subr.mxu0 0.0
        %839 = vmatpush1.msra.mxu0 %v822
        %840 = vmatprep.subr.mxu0 0.0
        %841 = vmatpush1.msra.mxu0 %v823
        %842 = vmatprep.subr.mxu0 0.0
        %843 = vmatpush1.msra.mxu0 0.0
        %844 = vmatprep.subr.mxu0 0.0
        %845 = vmatpush1.msra.mxu0 0.0
        %846 = vmatprep.subr.mxu0 0.0
        %847 = vmatpush1.msra.mxu0 0.0
        %848 = vmatprep.subr.mxu0 0.0
        %849 = vmatpush1.msra.mxu0 0.0
        %850 = vmatprep.subr.mxu0 0.0
        %851 = vmatpush1.msra.mxu0 0.0
        %852 = vmatprep.subr.mxu0 0.0
        %853 = vmatpush1.msra.mxu0 0.0
        %854 = vmatprep.subr.mxu0 0.0
        %855 = vmatpush1.msra.mxu0 0.0
        %856 = vmatprep.subr.mxu0 0.0
        %857 = vmatpush1.msra.mxu0 0.0
        %858 = vmatprep.subr.mxu0 0.0
        %859 = vmatpush1.msra.mxu0 0.0
        %860 = vmatprep.subr.mxu0 0.0
        %861 = vmatpush1.msra.mxu0 0.0
        %862 = vmatprep.subr.mxu0 0.0
        %863 = vmatpush1.msra.mxu0 0.0
        %864 = vmatprep.subr.mxu0 0.0
        %865 = vmatpush1.msra.mxu0 0.0
        %866 = vmatprep.subr.mxu0 0.0
        %867 = vmatpush1.msra.mxu0 0.0
        %868 = vmatprep.subr.mxu0 0.0
        %869 = vmatpush1.msra.mxu0 0.0
        %870 = vmatprep.subr.mxu0 0.0
        %871 = vmatpush1.msra.mxu0 0.0
        %872 = vmatprep.subr.mxu0 0.0
        %873 = vmatpush1.msra.mxu0 0.0
        %874 = vmatprep.subr.mxu0 0.0
        %875 = vmatpush1.msra.mxu0 0.0
        %876 = vmatprep.subr.mxu0 0.0
        %877 = vmatpush1.msra.mxu0 0.0
        %878 = vmatprep.subr.mxu0 0.0
        %879 = vmatpush1.msra.mxu0 0.0
        %880 = vmatprep.subr.mxu0 0.0
        %881 = vmatpush1.msra.mxu0 0.0
        %882 = vmatprep.subr.mxu0 0.0
        %883 = vmatpush1.msra.mxu0 0.0
        %884 = vmatprep.subr.mxu0 0.0
        %885 = vmatpush1.msra.mxu0 0.0
        %886 = vmatprep.subr.mxu0 0.0
        %887 = vmatpush1.msra.mxu0 0.0
        %888 = vmatprep.subr.mxu0 0.0
        %889 = vmatpush1.msra.mxu0 0.0
        %890 = vmatprep.subr.mxu0 0.0
        %891 = vmatpush1.msra.mxu0 0.0
        %892 = vmatprep.subr.mxu0 0.0
        %893 = vmatpush1.msra.mxu0 0.0
        %894 = vmatprep.subr.mxu0 0.0
        %895 = vmatpush1.msra.mxu0 0.0
        %896 = vmatprep.subr.mxu0 0.0
        %897 = vmatpush1.msra.mxu0 0.0
        %898 = vmatprep.mubr.f32.mxu0 0.0
        %899 = vmatmul.mubr.f32.gmra.mrb[0].mxu0 %v829
        %v900 = vpop.f32.mrb[0].mxu0
        %v901 = vadd.f32 %v827, %v900
        %v902 = vpop.f32.mrb[0].mxu0
        %903 = vmatprep.mubr.f32.mxu0 0.0
        %904 = vmatmul.mubr.f32.gmra.mrb[0].mxu0 %v832
        %v905 = vpop.f32.mrb[0].mxu0
        %v906 = vadd.f32 %v827, %v905
        %v907 = vpop.f32.mrb[0].mxu0
        %908 = vdwg.mxu0
        %v909 = vtanh.pop %v901
        %v910 = vtanh.pop %v906
        %v911 = vmul.f32 %v909, %v909
        %v912 = vmul.f32 %v910, %v910
        %v913 = vsel %vm555, %v911, 0.0
        %914 = vadd.xlane.f32.xlu0 %v913
        %v915 = vpop.xlane.xlu0 %914
        %v916 = vsel %vm555, %v912, 0.0
        %917 = vadd.xlane.f32.xlu0 %v916
        %v918 = vpop.xlane.xlu0 %917
        %v919 = vrsqrt.pop %v915
        %v920 = vrsqrt.pop %v918
        %v921 = vmin.f32 %v919, 1.0
        %v922 = vmin.f32 %v920, 1.0
        %v923 = vmul.f32 %v909, %v921
        %v924 = vmul.f32 %v910, %v922
        %v925 = vmul.f32 %v518, %v923
        %v926 = vmul.f32 %v519, %v924
        %v927 = vsel %vm555, %v925, 0.0
        %928 = vadd.xlane.f32.xlu0 %v927
        %v929 = vpop.xlane.xlu0 %928
        %v930 = vsel %vm555, %v926, 0.0
        %931 = vadd.xlane.f32.xlu0 %v930
        %v932 = vpop.xlane.xlu0 %931
        %v933 = vmul.f32 %v520, %v923
        %v934 = vmul.f32 %v521, %v924
        %v935 = vsel %vm555, %v933, 0.0
        %936 = vadd.xlane.f32.xlu0 %v935
        %v937 = vpop.xlane.xlu0 %936
        %v938 = vsel %vm555, %v934, 0.0
        %939 = vadd.xlane.f32.xlu0 %v938
        %v940 = vpop.xlane.xlu0 %939
        %v941 = vmul.f32 %v929, %v929
        %v942 = vmul.f32 %v932, %v932
        %v943 = vmul.f32 %v937, %v937
        %v944 = vmul.f32 %v940, %v940
        %v945 = vadd.f32 %v941, %v943
        %v946 = vadd.f32 %v942, %v944
        %v947 = vlaneseq
        %v948 = vshrl.u32 %v947, 7
        %v949 = vsub.s32 7, %v948
        %v950 = vrot.slane %v525, %v949
        %v951 = vmul.f32 %v945, %v950
        %v952 = vmul.f32 %v946, %v950
        %v954 = vsel %vm530, %v554, 0
        %956 = vmatprep.subr.mxu0 0.0
        %957 = vmatpush1.msra.mxu0 %v951
        %958 = vmatprep.subr.mxu0 0.0
        %959 = vmatpush1.msra.mxu0 %v952
        %960 = vmatprep.subr.mxu0 0.0
        %961 = vmatpush1.msra.mxu0 0.0
        %962 = vmatprep.subr.mxu0 0.0
        %963 = vmatpush1.msra.mxu0 0.0
        %964 = vmatprep.subr.mxu0 0.0
        %965 = vmatpush1.msra.mxu0 0.0
        %966 = vmatprep.subr.mxu0 0.0
        %967 = vmatpush1.msra.mxu0 0.0
        %968 = vmatprep.subr.mxu0 0.0
        %969 = vmatpush1.msra.mxu0 0.0
        %970 = vmatprep.subr.mxu0 0.0
        %971 = vmatpush1.msra.mxu0 0.0
        %972 = vmatprep.subr.mxu0 0.0
        %973 = vmatpush1.msra.mxu0 0.0
        %974 = vmatprep.subr.mxu0 0.0
        %975 = vmatpush1.msra.mxu0 0.0
        %976 = vmatprep.subr.mxu0 0.0
        %977 = vmatpush1.msra.mxu0 0.0
        %978 = vmatprep.subr.mxu0 0.0
        %979 = vmatpush1.msra.mxu0 0.0
        %980 = vmatprep.subr.mxu0 0.0
        %981 = vmatpush1.msra.mxu0 0.0
        %982 = vmatprep.subr.mxu0 0.0
        %983 = vmatpush1.msra.mxu0 0.0
        %984 = vmatprep.subr.mxu0 0.0
        %985 = vmatpush1.msra.mxu0 0.0
        %986 = vmatprep.subr.mxu0 0.0
        %987 = vmatpush1.msra.mxu0 0.0
        %988 = vmatprep.subr.mxu0 0.0
        %989 = vmatpush1.msra.mxu0 0.0
        %990 = vmatprep.subr.mxu0 0.0
        %991 = vmatpush1.msra.mxu0 0.0
        %992 = vmatprep.subr.mxu0 0.0
        %993 = vmatpush1.msra.mxu0 0.0
        %994 = vmatprep.subr.mxu0 0.0
        %995 = vmatpush1.msra.mxu0 0.0
        %996 = vmatprep.subr.mxu0 0.0
        %997 = vmatpush1.msra.mxu0 0.0
        %998 = vmatprep.subr.mxu0 0.0
        %999 = vmatpush1.msra.mxu0 0.0
        %1000 = vmatprep.subr.mxu0 0.0
        %1001 = vmatpush1.msra.mxu0 0.0
        %1002 = vmatprep.subr.mxu0 0.0
        %1003 = vmatpush1.msra.mxu0 0.0
        %1004 = vmatprep.subr.mxu0 0.0
        %1005 = vmatpush1.msra.mxu0 0.0
        %1006 = vmatprep.subr.mxu0 0.0
        %1007 = vmatpush1.msra.mxu0 0.0
        %1008 = vmatprep.subr.mxu0 0.0
        %1009 = vmatpush1.msra.mxu0 0.0
        %1010 = vmatprep.subr.mxu0 0.0
        %1011 = vmatpush1.msra.mxu0 0.0
        %1012 = vmatprep.subr.mxu0 0.0
        %1013 = vmatpush1.msra.mxu0 0.0
        %1014 = vmatprep.subr.mxu0 0.0
        %1015 = vmatpush1.msra.mxu0 0.0
        %1016 = vmatprep.subr.mxu0 0.0
        %1017 = vmatpush1.msra.mxu0 0.0
        %1018 = vmatprep.subr.mxu0 0.0
        %1019 = vmatpush1.msra.mxu0 0.0
        %1020 = vmatprep.mubr.f32.mxu0 0.0
        %1021 = vmatmul.mubr.f32.gmra.mrb[0].mxu0 %v954
        %v1022 = vpop.f32.mrb[0].mxu0
        %v1023 = vadd.f32 0.0, %v1022
        %v1024 = vpop.f32.mrb[0].mxu0
        %1025 = vdwg.mxu0
        %v1026 = vld [vmem:[%s8] sm:$0xff]
        %v1027 = vld [vmem:[%s8 + $0x8] sm:$0xff]
        %v1028 = vld [vmem:[%s8 + $0x10] sm:$0xff]
        %v1029 = vld [vmem:[%s8 + $0x18] sm:$0xff]
        %v1031 = vsel %vm645, %v531, 0
        %1033 = vmatprep.subr.mxu0 0.0
        %1034 = vmatpush1.msra.mxu0 %v1026
        %1035 = vmatprep.subr.mxu0 0.0
        %1036 = vmatpush1.msra.mxu0 %v1027
        %1037 = vmatprep.subr.mxu0 0.0
        %1038 = vmatpush1.msra.mxu0 %v1028
        %1039 = vmatprep.subr.mxu0 0.0
        %1040 = vmatpush1.msra.mxu0 %v1029
        %1041 = vmatprep.subr.mxu0 0.0
        %1042 = vmatpush1.msra.mxu0 0.0
        %1043 = vmatprep.subr.mxu0 0.0
        %1044 = vmatpush1.msra.mxu0 0.0
        %1045 = vmatprep.subr.mxu0 0.0
        %1046 = vmatpush1.msra.mxu0 0.0
        %1047 = vmatprep.subr.mxu0 0.0
        %1048 = vmatpush1.msra.mxu0 0.0
        %1049 = vmatprep.subr.mxu0 0.0
        %1050 = vmatpush1.msra.mxu0 0.0
        %1051 = vmatprep.subr.mxu0 0.0
        %1052 = vmatpush1.msra.mxu0 0.0
        %1053 = vmatprep.subr.mxu0 0.0
        %1054 = vmatpush1.msra.mxu0 0.0
        %1055 = vmatprep.subr.mxu0 0.0
        %1056 = vmatpush1.msra.mxu0 0.0
        %1057 = vmatprep.subr.mxu0 0.0
        %1058 = vmatpush1.msra.mxu0 0.0
        %1059 = vmatprep.subr.mxu0 0.0
        %1060 = vmatpush1.msra.mxu0 0.0
        %1061 = vmatprep.subr.mxu0 0.0
        %1062 = vmatpush1.msra.mxu0 0.0
        %1063 = vmatprep.subr.mxu0 0.0
        %1064 = vmatpush1.msra.mxu0 0.0
        %1065 = vmatprep.subr.mxu0 0.0
        %1066 = vmatpush1.msra.mxu0 0.0
        %1067 = vmatprep.subr.mxu0 0.0
        %1068 = vmatpush1.msra.mxu0 0.0
        %1069 = vmatprep.subr.mxu0 0.0
        %1070 = vmatpush1.msra.mxu0 0.0
        %1071 = vmatprep.subr.mxu0 0.0
        %1072 = vmatpush1.msra.mxu0 0.0
        %1073 = vmatprep.subr.mxu0 0.0
        %1074 = vmatpush1.msra.mxu0 0.0
        %1075 = vmatprep.subr.mxu0 0.0
        %1076 = vmatpush1.msra.mxu0 0.0
        %1077 = vmatprep.subr.mxu0 0.0
        %1078 = vmatpush1.msra.mxu0 0.0
        %1079 = vmatprep.subr.mxu0 0.0
        %1080 = vmatpush1.msra.mxu0 0.0
        %1081 = vmatprep.subr.mxu0 0.0
        %1082 = vmatpush1.msra.mxu0 0.0
        %1083 = vmatprep.subr.mxu0 0.0
        %1084 = vmatpush1.msra.mxu0 0.0
        %1085 = vmatprep.subr.mxu0 0.0
        %1086 = vmatpush1.msra.mxu0 0.0
        %1087 = vmatprep.subr.mxu0 0.0
        %1088 = vmatpush1.msra.mxu0 0.0
        %1089 = vmatprep.subr.mxu0 0.0
        %1090 = vmatpush1.msra.mxu0 0.0
        %1091 = vmatprep.subr.mxu0 0.0
        %1092 = vmatpush1.msra.mxu0 0.0
        %1093 = vmatprep.subr.mxu0 0.0
        %1094 = vmatpush1.msra.mxu0 0.0
        %1095 = vmatprep.subr.mxu0 0.0
        %1096 = vmatpush1.msra.mxu0 0.0
        %1097 = vmatprep.mubr.f32.mxu0 0.0
        %1098 = vmatmul.mubr.f32.gmra.mrb[0].mxu0 %v1031
        %v1099 = vpop.f32.mrb[0].mxu0
        %v1100 = vadd.f32 %v1023, %v1099
        %v1101 = vpop.f32.mrb[0].mxu0
        %1102 = vdwg.mxu0
        %v1103 = vlaneseq
        %v1104 = vshrl.u32 %v1103, 7
        %v1105 = vsub.s32 2, %v1104
        %v1106 = vrot.slane %v525, %v1105
        %v1107 = vadd.f32 %v1100, %v1106
        %v1108 = vmax.f32 %v1107, 0.0
        %v1109 = vld [vmem:[%s9] sm:$0xff]
        %v1110 = vld [vmem:[%s9 + $0x8] sm:$0xff]
        %v1111 = vld [vmem:[%s9 + $0x10] sm:$0xff]
        %v1112 = vld [vmem:[%s9 + $0x18] sm:$0xff]
        %v1113 = vlaneseq
        %v1114 = vshrl.u32 %v1113, 7
        %v1115 = vsub.s32 4, %v1114
        %v1116 = vrot.slane %v525, %v1115
        %v1118 = vsel %vm645, %v1108, 0
        %1120 = vmatprep.subr.mxu0 0.0
        %1121 = vmatpush1.msra.mxu0 %v1109
        %1122 = vmatprep.subr.mxu0 0.0
        %1123 = vmatpush1.msra.mxu0 %v1110
        %1124 = vmatprep.subr.mxu0 0.0
        %1125 = vmatpush1.msra.mxu0 %v1111
        %1126 = vmatprep.subr.mxu0 0.0
        %1127 = vmatpush1.msra.mxu0 %v1112
        %1128 = vmatprep.subr.mxu0 0.0
        %1129 = vmatpush1.msra.mxu0 0.0
        %1130 = vmatprep.subr.mxu0 0.0
        %1131 = vmatpush1.msra.mxu0 0.0
        %1132 = vmatprep.subr.mxu0 0.0
        %1133 = vmatpush1.msra.mxu0 0.0
        %1134 = vmatprep.subr.mxu0 0.0
        %1135 = vmatpush1.msra.mxu0 0.0
        %1136 = vmatprep.subr.mxu0 0.0
        %1137 = vmatpush1.msra.mxu0 0.0
        %1138 = vmatprep.subr.mxu0 0.0
        %1139 = vmatpush1.msra.mxu0 0.0
        %1140 = vmatprep.subr.mxu0 0.0
        %1141 = vmatpush1.msra.mxu0 0.0
        %1142 = vmatprep.subr.mxu0 0.0
        %1143 = vmatpush1.msra.mxu0 0.0
        %1144 = vmatprep.subr.mxu0 0.0
        %1145 = vmatpush1.msra.mxu0 0.0
        %1146 = vmatprep.subr.mxu0 0.0
        %1147 = vmatpush1.msra.mxu0 0.0
        %1148 = vmatprep.subr.mxu0 0.0
        %1149 = vmatpush1.msra.mxu0 0.0
        %1150 = vmatprep.subr.mxu0 0.0
        %1151 = vmatpush1.msra.mxu0 0.0
        %1152 = vmatprep.subr.mxu0 0.0
        %1153 = vmatpush1.msra.mxu0 0.0
        %1154 = vmatprep.subr.mxu0 0.0
        %1155 = vmatpush1.msra.mxu0 0.0
        %1156 = vmatprep.subr.mxu0 0.0
        %1157 = vmatpush1.msra.mxu0 0.0
        %1158 = vmatprep.subr.mxu0 0.0
        %1159 = vmatpush1.msra.mxu0 0.0
        %1160 = vmatprep.subr.mxu0 0.0
        %1161 = vmatpush1.msra.mxu0 0.0
        %1162 = vmatprep.subr.mxu0 0.0
        %1163 = vmatpush1.msra.mxu0 0.0
        %1164 = vmatprep.subr.mxu0 0.0
        %1165 = vmatpush1.msra.mxu0 0.0
        %1166 = vmatprep.subr.mxu0 0.0
        %1167 = vmatpush1.msra.mxu0 0.0
        %1168 = vmatprep.subr.mxu0 0.0
        %1169 = vmatpush1.msra.mxu0 0.0
        %1170 = vmatprep.subr.mxu0 0.0
        %1171 = vmatpush1.msra.mxu0 0.0
        %1172 = vmatprep.subr.mxu0 0.0
        %1173 = vmatpush1.msra.mxu0 0.0
        %1174 = vmatprep.subr.mxu0 0.0
        %1175 = vmatpush1.msra.mxu0 0.0
        %1176 = vmatprep.subr.mxu0 0.0
        %1177 = vmatpush1.msra.mxu0 0.0
        %1178 = vmatprep.subr.mxu0 0.0
        %1179 = vmatpush1.msra.mxu0 0.0
        %1180 = vmatprep.subr.mxu0 0.0
        %1181 = vmatpush1.msra.mxu0 0.0
        %1182 = vmatprep.subr.mxu0 0.0
        %1183 = vmatpush1.msra.mxu0 0.0
        %1184 = vmatprep.mubr.f32.mxu0 0.0
        %1185 = vmatmul.mubr.f32.gmra.mrb[0].mxu0 %v1118
        %v1186 = vpop.f32.mrb[0].mxu0
        %v1187 = vadd.f32 %v1116, %v1186
        %v1188 = vpop.f32.mrb[0].mxu0
        %1189 = vdwg.mxu0
        %v1190 = vmax.f32 %v1187, 0.0
        %v1191 = vtanh.pop %v1190
        %1192 = vst.msk [vmem:[#allocation2] sm:$0xff] %vm530, %v1191
        %v1193 = vld [vmem:[%s10] sm:$0xff]
        %v1194 = vld [vmem:[%s10 + $0x8] sm:$0xff]
        %v1195 = vlaneseq
        %v1196 = vshrl.u32 %v1195, 7
        %v1197 = vsub.s32 3, %v1196
        %v1198 = vrot.slane %v525, %v1197
        %v1200 = vsel %vm530, %v1191, 0
        %1202 = vmatprep.subr.mxu0 0.0
        %1203 = vmatpush1.msra.mxu0 %v1193
        %1204 = vmatprep.subr.mxu0 0.0
        %1205 = vmatpush1.msra.mxu0 %v1194
        %1206 = vmatprep.subr.mxu0 0.0
        %1207 = vmatpush1.msra.mxu0 0.0
        %1208 = vmatprep.subr.mxu0 0.0
        %1209 = vmatpush1.msra.mxu0 0.0
        %1210 = vmatprep.subr.mxu0 0.0
        %1211 = vmatpush1.msra.mxu0 0.0
        %1212 = vmatprep.subr.mxu0 0.0
        %1213 = vmatpush1.msra.mxu0 0.0
        %1214 = vmatprep.subr.mxu0 0.0
        %1215 = vmatpush1.msra.mxu0 0.0
        %1216 = vmatprep.subr.mxu0 0.0
        %1217 = vmatpush1.msra.mxu0 0.0
        %1218 = vmatprep.subr.mxu0 0.0
        %1219 = vmatpush1.msra.mxu0 0.0
        %1220 = vmatprep.subr.mxu0 0.0
        %1221 = vmatpush1.msra.mxu0 0.0
        %1222 = vmatprep.subr.mxu0 0.0
        %1223 = vmatpush1.msra.mxu0 0.0
        %1224 = vmatprep.subr.mxu0 0.0
        %1225 = vmatpush1.msra.mxu0 0.0
        %1226 = vmatprep.subr.mxu0 0.0
        %1227 = vmatpush1.msra.mxu0 0.0
        %1228 = vmatprep.subr.mxu0 0.0
        %1229 = vmatpush1.msra.mxu0 0.0
        %1230 = vmatprep.subr.mxu0 0.0
        %1231 = vmatpush1.msra.mxu0 0.0
        %1232 = vmatprep.subr.mxu0 0.0
        %1233 = vmatpush1.msra.mxu0 0.0
        %1234 = vmatprep.subr.mxu0 0.0
        %1235 = vmatpush1.msra.mxu0 0.0
        %1236 = vmatprep.subr.mxu0 0.0
        %1237 = vmatpush1.msra.mxu0 0.0
        %1238 = vmatprep.subr.mxu0 0.0
        %1239 = vmatpush1.msra.mxu0 0.0
        %1240 = vmatprep.subr.mxu0 0.0
        %1241 = vmatpush1.msra.mxu0 0.0
        %1242 = vmatprep.subr.mxu0 0.0
        %1243 = vmatpush1.msra.mxu0 0.0
        %1244 = vmatprep.subr.mxu0 0.0
        %1245 = vmatpush1.msra.mxu0 0.0
        %1246 = vmatprep.subr.mxu0 0.0
        %1247 = vmatpush1.msra.mxu0 0.0
        %1248 = vmatprep.subr.mxu0 0.0
        %1249 = vmatpush1.msra.mxu0 0.0
        %1250 = vmatprep.subr.mxu0 0.0
        %1251 = vmatpush1.msra.mxu0 0.0
        %1252 = vmatprep.subr.mxu0 0.0
        %1253 = vmatpush1.msra.mxu0 0.0
        %1254 = vmatprep.subr.mxu0 0.0
        %1255 = vmatpush1.msra.mxu0 0.0
        %1256 = vmatprep.subr.mxu0 0.0
        %1257 = vmatpush1.msra.mxu0 0.0
        %1258 = vmatprep.subr.mxu0 0.0
        %1259 = vmatpush1.msra.mxu0 0.0
        %1260 = vmatprep.subr.mxu0 0.0
        %1261 = vmatpush1.msra.mxu0 0.0
        %1262 = vmatprep.subr.mxu0 0.0
        %1263 = vmatpush1.msra.mxu0 0.0
        %1264 = vmatprep.subr.mxu0 0.0
        %1265 = vmatpush1.msra.mxu0 0.0
        %1266 = vmatprep.mubr.f32.mxu0 0.0
        %1267 = vmatmul.mubr.f32.gmra.mrb[0].mxu0 %v1200
        %v1268 = vpop.f32.mrb[0].mxu0
        %v1269 = vadd.f32 %v1198, %v1268
        %v1270 = vpop.f32.mrb[0].mxu0
        %1271 = vdwg.mxu0
        %v1272 = vmax.f32 %v1269, 0.0
        %v1273 = vld [vmem:[%s11] sm:$0xff]
        %v1274 = vld [vmem:[%s11 + $0x8] sm:$0xff]
        %v1275 = vld [vmem:[%s11 + $0x10] sm:$0xff]
        %v1276 = vld [vmem:[%s11 + $0x18] sm:$0xff]
        %v1277 = vlaneseq
        %v1278 = vshrl.u32 %v1277, 7
        %v1279 = vsub.s32 6, %v1278
        %v1280 = vrot.slane %v525, %v1279
        %v1282 = vsel %vm645, %v1272, 0
        %1284 = vmatprep.subr.mxu0 0.0
        %1285 = vmatpush1.msra.mxu0 %v1273
        %1286 = vmatprep.subr.mxu0 0.0
        %1287 = vmatpush1.msra.mxu0 %v1274
        %1288 = vmatprep.subr.mxu0 0.0
        %1289 = vmatpush1.msra.mxu0 %v1275
        %1290 = vmatprep.subr.mxu0 0.0
        %1291 = vmatpush1.msra.mxu0 %v1276
        %1292 = vmatprep.subr.mxu0 0.0
        %1293 = vmatpush1.msra.mxu0 0.0
        %1294 = vmatprep.subr.mxu0 0.0
        %1295 = vmatpush1.msra.mxu0 0.0
        %1296 = vmatprep.subr.mxu0 0.0
        %1297 = vmatpush1.msra.mxu0 0.0
        %1298 = vmatprep.subr.mxu0 0.0
        %1299 = vmatpush1.msra.mxu0 0.0
        %1300 = vmatprep.subr.mxu0 0.0
        %1301 = vmatpush1.msra.mxu0 0.0
        %1302 = vmatprep.subr.mxu0 0.0
        %1303 = vmatpush1.msra.mxu0 0.0
        %1304 = vmatprep.subr.mxu0 0.0
        %1305 = vmatpush1.msra.mxu0 0.0
        %1306 = vmatprep.subr.mxu0 0.0
        %1307 = vmatpush1.msra.mxu0 0.0
        %1308 = vmatprep.subr.mxu0 0.0
        %1309 = vmatpush1.msra.mxu0 0.0
        %1310 = vmatprep.subr.mxu0 0.0
        %1311 = vmatpush1.msra.mxu0 0.0
        %1312 = vmatprep.subr.mxu0 0.0
        %1313 = vmatpush1.msra.mxu0 0.0
        %1314 = vmatprep.subr.mxu0 0.0
        %1315 = vmatpush1.msra.mxu0 0.0
        %1316 = vmatprep.subr.mxu0 0.0
        %1317 = vmatpush1.msra.mxu0 0.0
        %1318 = vmatprep.subr.mxu0 0.0
        %1319 = vmatpush1.msra.mxu0 0.0
        %1320 = vmatprep.subr.mxu0 0.0
        %1321 = vmatpush1.msra.mxu0 0.0
        %1322 = vmatprep.subr.mxu0 0.0
        %1323 = vmatpush1.msra.mxu0 0.0
        %1324 = vmatprep.subr.mxu0 0.0
        %1325 = vmatpush1.msra.mxu0 0.0
        %1326 = vmatprep.subr.mxu0 0.0
        %1327 = vmatpush1.msra.mxu0 0.0
        %1328 = vmatprep.subr.mxu0 0.0
        %1329 = vmatpush1.msra.mxu0 0.0
        %1330 = vmatprep.subr.mxu0 0.0
        %1331 = vmatpush1.msra.mxu0 0.0
        %1332 = vmatprep.subr.mxu0 0.0
        %1333 = vmatpush1.msra.mxu0 0.0
        %1334 = vmatprep.subr.mxu0 0.0
        %1335 = vmatpush1.msra.mxu0 0.0
        %1336 = vmatprep.subr.mxu0 0.0
        %1337 = vmatpush1.msra.mxu0 0.0
        %1338 = vmatprep.subr.mxu0 0.0
        %1339 = vmatpush1.msra.mxu0 0.0
        %1340 = vmatprep.subr.mxu0 0.0
        %1341 = vmatpush1.msra.mxu0 0.0
        %1342 = vmatprep.subr.mxu0 0.0
        %1343 = vmatpush1.msra.mxu0 0.0
        %1344 = vmatprep.subr.mxu0 0.0
        %1345 = vmatpush1.msra.mxu0 0.0
        %1346 = vmatprep.subr.mxu0 0.0
        %1347 = vmatpush1.msra.mxu0 0.0
        %1348 = vmatprep.mubr.f32.mxu0 0.0
        %1349 = vmatmul.mubr.f32.gmra.mrb[0].mxu0 %v1282
        %v1350 = vpop.f32.mrb[0].mxu0
        %v1351 = vadd.f32 %v1280, %v1350
        %v1352 = vpop.f32.mrb[0].mxu0
        %1353 = vdwg.mxu0
        %v1354 = vtanh.pop %v1351
        %v1355 = vmul.f32 %v1354, %v1354
        %v1356 = vsel %vm555, %v1355, 0.0
        %1357 = vadd.xlane.f32.xlu0 %v1356
        %v1358 = vpop.xlane.xlu0 %1357
        %v1359 = vrsqrt.pop %v1358
        %v1360 = vmin.f32 %v1359, 1.0
        %v1361 = vmul.f32 %v1354, %v1360
        %1362 = vst.msk [vmem:[%s487] sm:$0xff] %vm555, %v1361
        %s1363 = sand.u32 %s333, 1
        %s1364 = scalar_lea.sflag [#allocation4], %s1363
        %s1365 = sand.u32 %s333, 1
        %s1366 = smul.addr %s1365, 8
        %s1367 = scalar_lea.vmem [#allocation3], %s1366
        // Predicated region
        $region77: #{pg4u_forward.1} parent=71 // pred_check
          %p1368 = pneg %p343
        $region78: #{pg4u_forward.1} parent=71 // pred_check_branch
          %1370 = sbr.rel (%p1368) target = $region80
        $region79: #{pg4u_forward.1} parent=71 // pred_region
          %s1372 = ssub.s32 128, 128
          %1373 = vsyncadd %s1364, %s1372
          %s1374 = smul.addr %s27, 128
          %s1375 = scalar_lea.hbm %s13, %s1374
          %s1377 = sshll.u32 %s1367, 4
          %s1378 = int_to_ptr.vmem [resolvable:$true] %s1377
          %1380 = dma.vmem_to_hbm [thread:$0]  %s1378, 128, %s1375, %s1364
        $region80: #{pg4u_forward.1} parent=71 // pred_fallthru
          _
      $region72: #{pg4u_forward.1} parent=5 // pred_fallthru
        _
      %p1381 = scmp.le.s32.totalorder 2, %s22
      // Predicated region
      $region81: #{pg4u_forward.1} parent=5 // pred_check
        %p1382 = pneg %p1381
      $region82: #{pg4u_forward.1} parent=5 // pred_check_branch
        %1384 = sbr.rel (%p1382) target = $region84
      $region83: #{pg4u_forward.1} parent=5 // pred_region
        %s1385 = ssub.s32 %s22, 2
        // Predicated region
        $region85: #{pg4u_forward.1} parent=83 // pred_check
          %p1386 = pneg %p349
        $region86: #{pg4u_forward.1} parent=83 // pred_check_branch
          %1388 = sbr.rel (%p1386) target = $region88
        $region87: #{pg4u_forward.1} parent=83 // pred_region
          %s1389 = sand.u32 %s334, 1
          %s1390 = scalar_lea.sflag [#allocation4], %s1389
          %s1391 = sand.u32 %s334, 1
          %s1392 = smul.addr %s1391, 8
          %s1393 = scalar_lea.vmem [#allocation3], %s1392
          %1394 = dma.done %s1390, 128
        $region88: #{pg4u_forward.1} parent=83 // pred_fallthru
          _
      $region84: #{pg4u_forward.1} parent=5 // pred_fallthru
        _
    $region6: #{pg4u_forward.1} parent=1 // loop_footer
      %s26 = sadd.s32 1, %s22
    $region7: #{pg4u_forward.1} parent=1 // loop_footer_branch
      %21 = sbr.rel target = $region3
    $region8: #{pg4u_forward.1} parent=1 // loop_exit
      _
    %1395 = vsyncpa [#allocation4], 1
    %s1396 = scalar_lea.sflag [#allocation4], 1
    %1397 = vsyncpa %s1396, 1

</llo_original>
